<compile_context>
chip_gen: v7x
topology: tpu7x:2x2x1
jax: 0.10.0
libtpu: 0.0.40
codegen_flags: <defaults>
</compile_context>

<pallas_src>
import functools

import jax
import jax.numpy as jnp
import numpy as np
from jax.experimental import pallas as pl
from jax.experimental.pallas import tpu as pltpu

EPS = 1e-5
LANE = 128
N_BN = 7          # BatchNorm layers (every Linear except the last)
N_LAYERS = 8      # Linear layers

# Per-layer real fan-in rounded up to a multiple of 8 sublanes, and the static row
# offset of each layer's weight slab inside the packed (648, 128) blob.
LAYER_ROWS = (40, 128, 128, 128, 64, 64, 64, 32)
LAYER_OFFS = (0, 40, 168, 296, 424, 488, 552, 616)
W_TOTAL_ROWS = sum(LAYER_ROWS)   # 648


# ----------------------------------------------------------------------------- kernel
def pose_regressor_kernel(x_ref, v_ref, w_hbm, out_ref, wbuf, sem):
    """Fused forward pass.

    x_ref  : (N, 128)      f32 VMEM, input zero-padded from 34 to 128 lanes
    v_ref  : (16, 128)     f32 VMEM, rows 0-6 BN gammas, 7-13 BN betas, 14 final bias
    w_hbm  : (648, 128)    f32 HBM (pl.ANY), packed per-layer weights, (in, out) layout
    out_ref: (N, 128)      f32 VMEM, real outputs in cols 0..7
    wbuf   : (2, 128, 128) f32 VMEM scratch (weight double buffer)
    sem    : DMA semaphores, shape (2,)
    """

    def slab_copy(layer, slot):
        off, rows = LAYER_OFFS[layer], LAYER_ROWS[layer]
        return pltpu.make_async_copy(
            w_hbm.at[off:off + rows, :],
            wbuf.at[slot, :rows, :],
            sem.at[slot],
        )

    # Prime slot 0 with layer 0's slab before doing anything else.
    slab_copy(0, 0).start()

    x = x_ref[...]       # (N, 128)
    vecs = v_ref[...]    # (16, 128)

    def lin(h, layer):
        slot = layer & 1
        rows = LAYER_ROWS[layer]
        slab_copy(layer, slot).wait()
        if layer + 1 < N_LAYERS:
            # Prefetch the next layer's slab into the other slot while the MXU works.
            slab_copy(layer + 1, 1 - slot).start()
        w = wbuf[slot, :rows, :]                     # (rows, 128)
        # Padded lanes of h beyond `rows` are exactly zero, so contracting only the
        # first `rows` lanes is exact. f32 accumulate on the MXU.
        return jnp.dot(h[:, :rows], w, preferred_element_type=jnp.float32)

    def bn(z, idx):
        # Train-mode BatchNorm1d: one-pass batch stats + folded affine
        # (s = g*rsqrt(var+eps), t = beta - mu*s) -> one mul + one add per element.
        g = vecs[idx:idx + 1, :]                     # (1, 128)
        be = vecs[N_BN + idx:N_BN + idx + 1, :]      # (1, 128)
        inv_n = 1.0 / z.shape[0]
        mu = jnp.sum(z, axis=0, keepdims=True) * inv_n
        ms = jnp.sum(z * z, axis=0, keepdims=True) * inv_n
        var = jnp.maximum(ms - mu * mu, 0.0)         # guard tiny negative cancellation
        s = g * jax.lax.rsqrt(var + EPS)
        t = be - mu * s
        return z * s + t

    relu = lambda z: jnp.maximum(z, 0.0)

    # Linear(34,128) -> BN -> ReLU
    h = relu(bn(lin(x, 0), 0))

    # ResidualBlock(128,128): Lin -> BN -> ReLU -> Lin -> BN, + identity, ReLU
    r = h
    a = relu(bn(lin(h, 1), 1))
    h = relu(bn(lin(a, 2), 2) + r)

    # Linear(128,64) -> BN -> ReLU        (cols 64..127 stay exactly zero)
    h = relu(bn(lin(h, 3), 3))

    # ResidualBlock(64,64)
    r = h
    a = relu(bn(lin(h, 4), 4))
    h = relu(bn(lin(a, 5), 5) + r)

    # Linear(64,32) -> BN -> ReLU         (cols 32..127 stay exactly zero)
    h = relu(bn(lin(h, 6), 6))

    # Linear(32,8) + bias                 (cols 8..127 stay exactly zero)
    out_ref[...] = lin(h, 7) + vecs[2 * N_BN:2 * N_BN + 1, :]


# ----------------------------------------------------------------------------- wrapper
@functools.partial(jax.jit, static_argnames=("out_dim",))
def pose_regressor(x, w_blob, v_blob, out_dim=8):
    """x: (N, d) float32 with d <= 128. Returns (N, out_dim) float32."""
    n, d = x.shape
    x_pad = jnp.pad(x.astype(jnp.float32), ((0, 0), (0, LANE - d)))

    vmem = pl.BlockSpec(memory_space=pltpu.MemorySpace.VMEM)
    out = pl.pallas_call(
        pose_regressor_kernel,
        out_shape=jax.ShapeDtypeStruct((n, LANE), jnp.float32),
        in_specs=[vmem, vmem, pl.BlockSpec(memory_space=pl.ANY)],
        out_specs=vmem,
        scratch_shapes=[
            pltpu.VMEM((2, LANE, LANE), jnp.float32),
            pltpu.SemaphoreType.DMA((2,)),
        ],
        # Whole batch + activations + the 128 KiB weight double-buffer fit easily;
        # explicit limit keeps the budget stated for v7x's smaller VMEM.
        compiler_params=pltpu.CompilerParams(vmem_limit_bytes=32 * 1024 * 1024),
    )(x_pad, v_blob, w_blob)
    return out[:, :out_dim]


# ----------------------------------------------------------------------------- params
def make_params(key, input_dim=34, output_dim=8, proj=128):
    """Synthetic parameters in PyTorch-equivalent granularity.
    Linear weights as (in, out); biases / BN gamma / BN beta as (1, dim)."""
    dims = [
        (input_dim, proj),  # L1
        (proj, 128),        # Res1 lin A
        (128, 128),         # Res1 lin B
        (128, 64),          # L2
        (64, 64),           # Res2 lin A
        (64, 64),           # Res2 lin B
        (64, 32),           # L3
        (32, output_dim),   # L4 (no BN)
    ]
    bn_after = [True, True, True, True, True, True, True, False]

    params = []
    for (din, dout), has_bn in zip(dims, bn_after):
        key, kw, kb, kg, kbe = jax.random.split(key, 5)
        w = jax.random.normal(kw, (din, dout), jnp.float32) / np.sqrt(din)
        b = 0.1 * jax.random.normal(kb, (1, dout), jnp.float32)
        params += [w, b]
        if has_bn:
            g = 1.0 + 0.1 * jax.random.normal(kg, (1, dout), jnp.float32)
            be = 0.1 * jax.random.normal(kbe, (1, dout), jnp.float32)
            params += [g, be]
    return params


def pack_params(params):
    """Pack the 30 per-layer tensors into the two kernel operands.

    Biases b1..b3 / residual biases are dropped: every one of them feeds a train-mode
    BatchNorm, whose mean subtraction cancels a per-feature constant exactly.
    """
    (w1, b1, g1, be1,
     wa, ba, ga, bea,
     wb, bb, gb, beb,
     w2, b2, g2, be2,
     wc, bc, gc, bec,
     wd, bd, gd, bed,
     w3, b3, g3, be3,
     w4, b4) = params

    ws = [w1, wa, wb, w2, wc, wd, w3, w4]
    gs = [g1, ga, gb, g2, gc, gd, g3]
    bes = [be1, bea, beb, be2, bec, bed, be3]

    w_blob = np.zeros((W_TOTAL_ROWS, LANE), np.float32)   # (648, 128) ~ 324 KiB
    for w, off, rows in zip(ws, LAYER_OFFS, LAYER_ROWS):
        w = np.asarray(w, np.float32)
        assert w.shape[0] <= rows and w.shape[1] <= LANE
        w_blob[off:off + w.shape[0], :w.shape[1]] = w

    v_blob = np.zeros((2 * N_BN + 2, LANE), np.float32)   # (16, 128)
    for i, g in enumerate(gs):
        v_blob[i, :g.shape[1]] = np.asarray(g, np.float32)[0]
    for i, be in enumerate(bes):
        v_blob[N_BN + i, :be.shape[1]] = np.asarray(be, np.float32)[0]
    v_blob[2 * N_BN, :b4.shape[1]] = np.asarray(b4, np.float32)[0]

    return jnp.asarray(w_blob), jnp.asarray(v_blob)


# ----------------------------------------------------------------------------- reference
def reference_forward(x, params):
    """Pure-JAX reference matching the PyTorch module in train() mode (with biases,
    two-pass batch statistics)."""
    (w1, b1, g1, be1,
     wa, ba, ga, bea,
     wb, bb, gb, beb,
     w2, b2, g2, be2,
     wc, bc, gc, bec,
     wd, bd, gd, bed,
     w3, b3, g3, be3,
     w4, b4) = params

    def bn(z, g, be):
        mu = jnp.mean(z, axis=0, keepdims=True)
        var = jnp.mean((z - mu) ** 2, axis=0, keepdims=True)
        return (z - mu) / jnp.sqrt(var + EPS) * g + be

    relu = lambda z: jnp.maximum(z, 0.0)
    lin = lambda h, w, b: h @ w + b

    h = relu(bn(lin(x, w1, b1), g1, be1))
    r = h
    a = relu(bn(lin(h, wa, ba), ga, bea))
    h = relu(bn(lin(a, wb, bb), gb, beb) + r)
    h = relu(bn(lin(h, w2, b2), g2, be2))
    r = h
    a = relu(bn(lin(h, wc, bc), gc, bec))
    h = relu(bn(lin(a, wd, bd), gd, bed) + r)
    h = relu(bn(lin(h, w3, b3), g3, be3))
    return lin(h, w4, b4)


# ----------------------------------------------------------------------------- main
if __name__ == "__main__":
    key = jax.random.PRNGKey(0)
    kx, kp = jax.random.split(key)

    batch, input_dim, output_dim = 8, 34, 8
    x = jax.random.normal(kx, (batch, input_dim), jnp.float32)
    params = make_params(kp, input_dim=input_dim, output_dim=output_dim)
    w_blob, v_blob = pack_params(params)

    out = jax.block_until_ready(pose_regressor(x, w_blob, v_blob, out_dim=output_dim))
    ref = jax.block_until_ready(reference_forward(x, params))

    assert out.shape == (batch, output_dim)
    np.testing.assert_allclose(np.asarray(out), np.asarray(ref), rtol=1e-4, atol=1e-4)

    print("KERNEL_OK")
</pallas_src>

<mosaic_0001>
module attributes {stable_mosaic.version = 11 : i64} {
  func.func @pose_regressor_kernel(%arg0: memref<8x128xf32, #tpu.memory_space<vmem>>, %arg1: memref<16x128xf32, #tpu.memory_space<vmem>>, %arg2: memref<648x128xf32, #tpu.memory_space<any>>, %arg3: memref<8x128xf32, #tpu.memory_space<vmem>>, %arg4: memref<2x128x128xf32, #tpu.memory_space<vmem>>, %arg5: memref<2x!tpu.dma_semaphore, #tpu.memory_space<semaphore_mem>>) attributes {dimension_semantics = [], scalar_prefetch = 0 : i64, scratch_operands = 2 : i64, tpu.core_type = #tpu.core_type<tc>} {
    %c0_i32 = arith.constant 0 : i32
    %c0_i32_0 = arith.constant 0 : i32
    %c0_i32_1 = arith.constant 0 : i32
    %c0_i32_2 = arith.constant 0 : i32
    %0 = tpu.memref_slice %arg2[%c0_i32_1, %c0_i32_2] : memref<648x128xf32, #tpu.memory_space<any>> -> memref<40x128xf32, #tpu.memory_space<any>>
    %c0_i32_3 = arith.constant 0 : i32
    %c0_i32_4 = arith.constant 0 : i32
    %1 = tpu.memref_slice %arg4[%c0_i32, %c0_i32_3, %c0_i32_4] : memref<2x128x128xf32, #tpu.memory_space<vmem>> -> memref<1x40x128xf32, #tpu.memory_space<vmem>>
    %2 = tpu.memref_squeeze %1 : memref<1x40x128xf32, #tpu.memory_space<vmem>> -> memref<40x128xf32, #tpu.memory_space<vmem>>
    %3 = tpu.memref_slice %arg5[%c0_i32_0] : memref<2x!tpu.dma_semaphore, #tpu.memory_space<semaphore_mem>> -> memref<1x!tpu.dma_semaphore, #tpu.memory_space<semaphore_mem>>
    %4 = tpu.memref_squeeze %3 : memref<1x!tpu.dma_semaphore, #tpu.memory_space<semaphore_mem>> -> memref<!tpu.dma_semaphore, #tpu.memory_space<semaphore_mem>>
    tpu.enqueue_dma source(%0 : memref<40x128xf32, #tpu.memory_space<any>>) target(%2 : memref<40x128xf32, #tpu.memory_space<vmem>>) target_semaphore(%4 : memref<!tpu.dma_semaphore, #tpu.memory_space<semaphore_mem>>)
    %c0 = arith.constant 0 : index
    %c0_5 = arith.constant 0 : index
    %5 = vector.load %arg0[%c0, %c0_5] : memref<8x128xf32, #tpu.memory_space<vmem>>, vector<8x128xf32>
    %c0_6 = arith.constant 0 : index
    %c0_7 = arith.constant 0 : index
    %6 = vector.load %arg1[%c0_6, %c0_7] : memref<16x128xf32, #tpu.memory_space<vmem>>, vector<16x128xf32>
    %c0_i32_8 = arith.constant 0 : i32
    %c0_i32_9 = arith.constant 0 : i32
    %c0_i32_10 = arith.constant 0 : i32
    %c0_i32_11 = arith.constant 0 : i32
    %7 = tpu.memref_slice %arg2[%c0_i32_10, %c0_i32_11] : memref<648x128xf32, #tpu.memory_space<any>> -> memref<40x128xf32, #tpu.memory_space<any>>
    %c0_i32_12 = arith.constant 0 : i32
    %c0_i32_13 = arith.constant 0 : i32
    %8 = tpu.memref_slice %arg4[%c0_i32_8, %c0_i32_12, %c0_i32_13] : memref<2x128x128xf32, #tpu.memory_space<vmem>> -> memref<1x40x128xf32, #tpu.memory_space<vmem>>
    %9 = tpu.memref_squeeze %8 : memref<1x40x128xf32, #tpu.memory_space<vmem>> -> memref<40x128xf32, #tpu.memory_space<vmem>>
    %10 = tpu.memref_slice %arg5[%c0_i32_9] : memref<2x!tpu.dma_semaphore, #tpu.memory_space<semaphore_mem>> -> memref<1x!tpu.dma_semaphore, #tpu.memory_space<semaphore_mem>>
    %11 = tpu.memref_squeeze %10 : memref<1x!tpu.dma_semaphore, #tpu.memory_space<semaphore_mem>> -> memref<!tpu.dma_semaphore, #tpu.memory_space<semaphore_mem>>
    tpu.wait_dma2 semaphore(%11 : memref<!tpu.dma_semaphore, #tpu.memory_space<semaphore_mem>>) src(%7 : memref<40x128xf32, #tpu.memory_space<any>>) dst(%9 : memref<40x128xf32, #tpu.memory_space<vmem>>)
    %c1_i32 = arith.constant 1 : i32
    %c1_i32_14 = arith.constant 1 : i32
    %c40_i32 = arith.constant 40 : i32
    %c0_i32_15 = arith.constant 0 : i32
    %12 = tpu.memref_slice %arg2[%c40_i32, %c0_i32_15] : memref<648x128xf32, #tpu.memory_space<any>> -> memref<128x128xf32, #tpu.memory_space<any>>
    %c0_i32_16 = arith.constant 0 : i32
    %c0_i32_17 = arith.constant 0 : i32
    %13 = tpu.memref_slice %arg4[%c1_i32, %c0_i32_16, %c0_i32_17] : memref<2x128x128xf32, #tpu.memory_space<vmem>> -> memref<1x128x128xf32, #tpu.memory_space<vmem>>
    %14 = tpu.memref_squeeze %13 : memref<1x128x128xf32, #tpu.memory_space<vmem>> -> memref<128x128xf32, #tpu.memory_space<vmem>>
    %15 = tpu.memref_slice %arg5[%c1_i32_14] : memref<2x!tpu.dma_semaphore, #tpu.memory_space<semaphore_mem>> -> memref<1x!tpu.dma_semaphore, #tpu.memory_space<semaphore_mem>>
    %16 = tpu.memref_squeeze %15 : memref<1x!tpu.dma_semaphore, #tpu.memory_space<semaphore_mem>> -> memref<!tpu.dma_semaphore, #tpu.memory_space<semaphore_mem>>
    tpu.enqueue_dma source(%12 : memref<128x128xf32, #tpu.memory_space<any>>) target(%14 : memref<128x128xf32, #tpu.memory_space<vmem>>) target_semaphore(%16 : memref<!tpu.dma_semaphore, #tpu.memory_space<semaphore_mem>>)
    %c0_18 = arith.constant 0 : index
    %c0_19 = arith.constant 0 : index
    %c0_20 = arith.constant 0 : index
    %17 = vector.load %arg4[%c0_18, %c0_19, %c0_20] : memref<2x128x128xf32, #tpu.memory_space<vmem>>, vector<1x40x128xf32>
    %18 = vector.shape_cast %17 : vector<1x40x128xf32> to vector<40x128xf32>
    %19 = vector.extract_strided_slice %5 {offsets = [0, 0], sizes = [8, 40], strides = [1, 1]} : vector<8x128xf32> to vector<8x40xf32>
    %cst = arith.constant dense<0.000000e+00> : vector<8x128xf32>
    %20 = tpu.matmul %19, %18, %cst {dimension_numbers = #tpu.dot_dimension_numbers<[1], [0], [0], [1], [0, 0, 1, 1], [], []>} : vector<8x40xf32>, vector<40x128xf32>, vector<8x128xf32> -> vector<8x128xf32>
    %21 = vector.extract_strided_slice %6 {offsets = [0, 0], sizes = [1, 128], strides = [1, 1]} : vector<16x128xf32> to vector<1x128xf32>
    %22 = vector.extract_strided_slice %6 {offsets = [7, 0], sizes = [1, 128], strides = [1, 1]} : vector<16x128xf32> to vector<1x128xf32>
    %cst_21 = arith.constant dense<0.000000e+00> : vector<128xf32>
    %23 = vector.multi_reduction <add>, %20, %cst_21 [0] : vector<8x128xf32> to vector<128xf32>
    %24 = vector.shape_cast %23 : vector<128xf32> to vector<1x128xf32>
    %cst_22 = arith.constant 1.250000e-01 : f32
    %25 = vector.broadcast %cst_22 : f32 to vector<1x128xf32>
    %26 = arith.mulf %24, %25 : vector<1x128xf32>
    %27 = arith.mulf %20, %20 : vector<8x128xf32>
    %cst_23 = arith.constant dense<0.000000e+00> : vector<128xf32>
    %28 = vector.multi_reduction <add>, %27, %cst_23 [0] : vector<8x128xf32> to vector<128xf32>
    %29 = vector.shape_cast %28 : vector<128xf32> to vector<1x128xf32>
    %cst_24 = arith.constant 1.250000e-01 : f32
    %30 = vector.broadcast %cst_24 : f32 to vector<1x128xf32>
    %31 = arith.mulf %29, %30 : vector<1x128xf32>
    %32 = arith.mulf %26, %26 : vector<1x128xf32>
    %33 = arith.subf %31, %32 : vector<1x128xf32>
    %cst_25 = arith.constant 0.000000e+00 : f32
    %34 = vector.broadcast %cst_25 : f32 to vector<1x128xf32>
    %35 = arith.maximumf %33, %34 : vector<1x128xf32>
    %cst_26 = arith.constant 9.99999974E-6 : f32
    %36 = vector.broadcast %cst_26 : f32 to vector<1x128xf32>
    %37 = arith.addf %35, %36 : vector<1x128xf32>
    %38 = math.rsqrt %37 : vector<1x128xf32>
    %39 = arith.mulf %21, %38 : vector<1x128xf32>
    %40 = arith.mulf %26, %39 : vector<1x128xf32>
    %41 = arith.subf %22, %40 : vector<1x128xf32>
    %42 = vector.broadcast %39 : vector<1x128xf32> to vector<8x128xf32>
    %43 = arith.mulf %20, %42 : vector<8x128xf32>
    %44 = vector.broadcast %41 : vector<1x128xf32> to vector<8x128xf32>
    %45 = arith.addf %43, %44 : vector<8x128xf32>
    %cst_27 = arith.constant 0.000000e+00 : f32
    %46 = vector.broadcast %cst_27 : f32 to vector<8x128xf32>
    %47 = arith.maximumf %45, %46 : vector<8x128xf32>
    %c1_i32_28 = arith.constant 1 : i32
    %c1_i32_29 = arith.constant 1 : i32
    %c40_i32_30 = arith.constant 40 : i32
    %c0_i32_31 = arith.constant 0 : i32
    %48 = tpu.memref_slice %arg2[%c40_i32_30, %c0_i32_31] : memref<648x128xf32, #tpu.memory_space<any>> -> memref<128x128xf32, #tpu.memory_space<any>>
    %c0_i32_32 = arith.constant 0 : i32
    %c0_i32_33 = arith.constant 0 : i32
    %49 = tpu.memref_slice %arg4[%c1_i32_28, %c0_i32_32, %c0_i32_33] : memref<2x128x128xf32, #tpu.memory_space<vmem>> -> memref<1x128x128xf32, #tpu.memory_space<vmem>>
    %50 = tpu.memref_squeeze %49 : memref<1x128x128xf32, #tpu.memory_space<vmem>> -> memref<128x128xf32, #tpu.memory_space<vmem>>
    %51 = tpu.memref_slice %arg5[%c1_i32_29] : memref<2x!tpu.dma_semaphore, #tpu.memory_space<semaphore_mem>> -> memref<1x!tpu.dma_semaphore, #tpu.memory_space<semaphore_mem>>
    %52 = tpu.memref_squeeze %51 : memref<1x!tpu.dma_semaphore, #tpu.memory_space<semaphore_mem>> -> memref<!tpu.dma_semaphore, #tpu.memory_space<semaphore_mem>>
    tpu.wait_dma2 semaphore(%52 : memref<!tpu.dma_semaphore, #tpu.memory_space<semaphore_mem>>) src(%48 : memref<128x128xf32, #tpu.memory_space<any>>) dst(%50 : memref<128x128xf32, #tpu.memory_space<vmem>>)
    %c0_i32_34 = arith.constant 0 : i32
    %c0_i32_35 = arith.constant 0 : i32
    %c168_i32 = arith.constant 168 : i32
    %c0_i32_36 = arith.constant 0 : i32
    %53 = tpu.memref_slice %arg2[%c168_i32, %c0_i32_36] : memref<648x128xf32, #tpu.memory_space<any>> -> memref<128x128xf32, #tpu.memory_space<any>>
    %c0_i32_37 = arith.constant 0 : i32
    %c0_i32_38 = arith.constant 0 : i32
    %54 = tpu.memref_slice %arg4[%c0_i32_34, %c0_i32_37, %c0_i32_38] : memref<2x128x128xf32, #tpu.memory_space<vmem>> -> memref<1x128x128xf32, #tpu.memory_space<vmem>>
    %55 = tpu.memref_squeeze %54 : memref<1x128x128xf32, #tpu.memory_space<vmem>> -> memref<128x128xf32, #tpu.memory_space<vmem>>
    %56 = tpu.memref_slice %arg5[%c0_i32_35] : memref<2x!tpu.dma_semaphore, #tpu.memory_space<semaphore_mem>> -> memref<1x!tpu.dma_semaphore, #tpu.memory_space<semaphore_mem>>
    %57 = tpu.memref_squeeze %56 : memref<1x!tpu.dma_semaphore, #tpu.memory_space<semaphore_mem>> -> memref<!tpu.dma_semaphore, #tpu.memory_space<semaphore_mem>>
    tpu.enqueue_dma source(%53 : memref<128x128xf32, #tpu.memory_space<any>>) target(%55 : memref<128x128xf32, #tpu.memory_space<vmem>>) target_semaphore(%57 : memref<!tpu.dma_semaphore, #tpu.memory_space<semaphore_mem>>)
    %c1 = arith.constant 1 : index
    %c0_39 = arith.constant 0 : index
    %c0_40 = arith.constant 0 : index
    %58 = vector.load %arg4[%c1, %c0_39, %c0_40] : memref<2x128x128xf32, #tpu.memory_space<vmem>>, vector<1x128x128xf32>
    %59 = vector.shape_cast %58 : vector<1x128x128xf32> to vector<128x128xf32>
    %cst_41 = arith.constant dense<0.000000e+00> : vector<8x128xf32>
    %60 = tpu.matmul %47, %59, %cst_41 {dimension_numbers = #tpu.dot_dimension_numbers<[1], [0], [0], [1], [0, 0, 1, 1], [], []>} : vector<8x128xf32>, vector<128x128xf32>, vector<8x128xf32> -> vector<8x128xf32>
    %61 = vector.extract_strided_slice %6 {offsets = [1, 0], sizes = [1, 128], strides = [1, 1]} : vector<16x128xf32> to vector<1x128xf32>
    %62 = vector.extract_strided_slice %6 {offsets = [8, 0], sizes = [1, 128], strides = [1, 1]} : vector<16x128xf32> to vector<1x128xf32>
    %cst_42 = arith.constant dense<0.000000e+00> : vector<128xf32>
    %63 = vector.multi_reduction <add>, %60, %cst_42 [0] : vector<8x128xf32> to vector<128xf32>
    %64 = vector.shape_cast %63 : vector<128xf32> to vector<1x128xf32>
    %cst_43 = arith.constant 1.250000e-01 : f32
    %65 = vector.broadcast %cst_43 : f32 to vector<1x128xf32>
    %66 = arith.mulf %64, %65 : vector<1x128xf32>
    %67 = arith.mulf %60, %60 : vector<8x128xf32>
    %cst_44 = arith.constant dense<0.000000e+00> : vector<128xf32>
    %68 = vector.multi_reduction <add>, %67, %cst_44 [0] : vector<8x128xf32> to vector<128xf32>
    %69 = vector.shape_cast %68 : vector<128xf32> to vector<1x128xf32>
    %cst_45 = arith.constant 1.250000e-01 : f32
    %70 = vector.broadcast %cst_45 : f32 to vector<1x128xf32>
    %71 = arith.mulf %69, %70 : vector<1x128xf32>
    %72 = arith.mulf %66, %66 : vector<1x128xf32>
    %73 = arith.subf %71, %72 : vector<1x128xf32>
    %cst_46 = arith.constant 0.000000e+00 : f32
    %74 = vector.broadcast %cst_46 : f32 to vector<1x128xf32>
    %75 = arith.maximumf %73, %74 : vector<1x128xf32>
    %cst_47 = arith.constant 9.99999974E-6 : f32
    %76 = vector.broadcast %cst_47 : f32 to vector<1x128xf32>
    %77 = arith.addf %75, %76 : vector<1x128xf32>
    %78 = math.rsqrt %77 : vector<1x128xf32>
    %79 = arith.mulf %61, %78 : vector<1x128xf32>
    %80 = arith.mulf %66, %79 : vector<1x128xf32>
    %81 = arith.subf %62, %80 : vector<1x128xf32>
    %82 = vector.broadcast %79 : vector<1x128xf32> to vector<8x128xf32>
    %83 = arith.mulf %60, %82 : vector<8x128xf32>
    %84 = vector.broadcast %81 : vector<1x128xf32> to vector<8x128xf32>
    %85 = arith.addf %83, %84 : vector<8x128xf32>
    %cst_48 = arith.constant 0.000000e+00 : f32
    %86 = vector.broadcast %cst_48 : f32 to vector<8x128xf32>
    %87 = arith.maximumf %85, %86 : vector<8x128xf32>
    %c0_i32_49 = arith.constant 0 : i32
    %c0_i32_50 = arith.constant 0 : i32
    %c168_i32_51 = arith.constant 168 : i32
    %c0_i32_52 = arith.constant 0 : i32
    %88 = tpu.memref_slice %arg2[%c168_i32_51, %c0_i32_52] : memref<648x128xf32, #tpu.memory_space<any>> -> memref<128x128xf32, #tpu.memory_space<any>>
    %c0_i32_53 = arith.constant 0 : i32
    %c0_i32_54 = arith.constant 0 : i32
    %89 = tpu.memref_slice %arg4[%c0_i32_49, %c0_i32_53, %c0_i32_54] : memref<2x128x128xf32, #tpu.memory_space<vmem>> -> memref<1x128x128xf32, #tpu.memory_space<vmem>>
    %90 = tpu.memref_squeeze %89 : memref<1x128x128xf32, #tpu.memory_space<vmem>> -> memref<128x128xf32, #tpu.memory_space<vmem>>
    %91 = tpu.memref_slice %arg5[%c0_i32_50] : memref<2x!tpu.dma_semaphore, #tpu.memory_space<semaphore_mem>> -> memref<1x!tpu.dma_semaphore, #tpu.memory_space<semaphore_mem>>
    %92 = tpu.memref_squeeze %91 : memref<1x!tpu.dma_semaphore, #tpu.memory_space<semaphore_mem>> -> memref<!tpu.dma_semaphore, #tpu.memory_space<semaphore_mem>>
    tpu.wait_dma2 semaphore(%92 : memref<!tpu.dma_semaphore, #tpu.memory_space<semaphore_mem>>) src(%88 : memref<128x128xf32, #tpu.memory_space<any>>) dst(%90 : memref<128x128xf32, #tpu.memory_space<vmem>>)
    %c1_i32_55 = arith.constant 1 : i32
    %c1_i32_56 = arith.constant 1 : i32
    %c296_i32 = arith.constant 296 : i32
    %c0_i32_57 = arith.constant 0 : i32
    %93 = tpu.memref_slice %arg2[%c296_i32, %c0_i32_57] : memref<648x128xf32, #tpu.memory_space<any>> -> memref<128x128xf32, #tpu.memory_space<any>>
    %c0_i32_58 = arith.constant 0 : i32
    %c0_i32_59 = arith.constant 0 : i32
    %94 = tpu.memref_slice %arg4[%c1_i32_55, %c0_i32_58, %c0_i32_59] : memref<2x128x128xf32, #tpu.memory_space<vmem>> -> memref<1x128x128xf32, #tpu.memory_space<vmem>>
    %95 = tpu.memref_squeeze %94 : memref<1x128x128xf32, #tpu.memory_space<vmem>> -> memref<128x128xf32, #tpu.memory_space<vmem>>
    %96 = tpu.memref_slice %arg5[%c1_i32_56] : memref<2x!tpu.dma_semaphore, #tpu.memory_space<semaphore_mem>> -> memref<1x!tpu.dma_semaphore, #tpu.memory_space<semaphore_mem>>
    %97 = tpu.memref_squeeze %96 : memref<1x!tpu.dma_semaphore, #tpu.memory_space<semaphore_mem>> -> memref<!tpu.dma_semaphore, #tpu.memory_space<semaphore_mem>>
    tpu.enqueue_dma source(%93 : memref<128x128xf32, #tpu.memory_space<any>>) target(%95 : memref<128x128xf32, #tpu.memory_space<vmem>>) target_semaphore(%97 : memref<!tpu.dma_semaphore, #tpu.memory_space<semaphore_mem>>)
    %c0_60 = arith.constant 0 : index
    %c0_61 = arith.constant 0 : index
    %c0_62 = arith.constant 0 : index
    %98 = vector.load %arg4[%c0_60, %c0_61, %c0_62] : memref<2x128x128xf32, #tpu.memory_space<vmem>>, vector<1x128x128xf32>
    %99 = vector.shape_cast %98 : vector<1x128x128xf32> to vector<128x128xf32>
    %cst_63 = arith.constant dense<0.000000e+00> : vector<8x128xf32>
    %100 = tpu.matmul %87, %99, %cst_63 {dimension_numbers = #tpu.dot_dimension_numbers<[1], [0], [0], [1], [0, 0, 1, 1], [], []>} : vector<8x128xf32>, vector<128x128xf32>, vector<8x128xf32> -> vector<8x128xf32>
    %101 = vector.extract_strided_slice %6 {offsets = [2, 0], sizes = [1, 128], strides = [1, 1]} : vector<16x128xf32> to vector<1x128xf32>
    %102 = vector.extract_strided_slice %6 {offsets = [9, 0], sizes = [1, 128], strides = [1, 1]} : vector<16x128xf32> to vector<1x128xf32>
    %cst_64 = arith.constant dense<0.000000e+00> : vector<128xf32>
    %103 = vector.multi_reduction <add>, %100, %cst_64 [0] : vector<8x128xf32> to vector<128xf32>
    %104 = vector.shape_cast %103 : vector<128xf32> to vector<1x128xf32>
    %cst_65 = arith.constant 1.250000e-01 : f32
    %105 = vector.broadcast %cst_65 : f32 to vector<1x128xf32>
    %106 = arith.mulf %104, %105 : vector<1x128xf32>
    %107 = arith.mulf %100, %100 : vector<8x128xf32>
    %cst_66 = arith.constant dense<0.000000e+00> : vector<128xf32>
    %108 = vector.multi_reduction <add>, %107, %cst_66 [0] : vector<8x128xf32> to vector<128xf32>
    %109 = vector.shape_cast %108 : vector<128xf32> to vector<1x128xf32>
    %cst_67 = arith.constant 1.250000e-01 : f32
    %110 = vector.broadcast %cst_67 : f32 to vector<1x128xf32>
    %111 = arith.mulf %109, %110 : vector<1x128xf32>
    %112 = arith.mulf %106, %106 : vector<1x128xf32>
    %113 = arith.subf %111, %112 : vector<1x128xf32>
    %cst_68 = arith.constant 0.000000e+00 : f32
    %114 = vector.broadcast %cst_68 : f32 to vector<1x128xf32>
    %115 = arith.maximumf %113, %114 : vector<1x128xf32>
    %cst_69 = arith.constant 9.99999974E-6 : f32
    %116 = vector.broadcast %cst_69 : f32 to vector<1x128xf32>
    %117 = arith.addf %115, %116 : vector<1x128xf32>
    %118 = math.rsqrt %117 : vector<1x128xf32>
    %119 = arith.mulf %101, %118 : vector<1x128xf32>
    %120 = arith.mulf %106, %119 : vector<1x128xf32>
    %121 = arith.subf %102, %120 : vector<1x128xf32>
    %122 = vector.broadcast %119 : vector<1x128xf32> to vector<8x128xf32>
    %123 = arith.mulf %100, %122 : vector<8x128xf32>
    %124 = vector.broadcast %121 : vector<1x128xf32> to vector<8x128xf32>
    %125 = arith.addf %123, %124 : vector<8x128xf32>
    %126 = arith.addf %125, %47 : vector<8x128xf32>
    %cst_70 = arith.constant 0.000000e+00 : f32
    %127 = vector.broadcast %cst_70 : f32 to vector<8x128xf32>
    %128 = arith.maximumf %126, %127 : vector<8x128xf32>
    %c1_i32_71 = arith.constant 1 : i32
    %c1_i32_72 = arith.constant 1 : i32
    %c296_i32_73 = arith.constant 296 : i32
    %c0_i32_74 = arith.constant 0 : i32
    %129 = tpu.memref_slice %arg2[%c296_i32_73, %c0_i32_74] : memref<648x128xf32, #tpu.memory_space<any>> -> memref<128x128xf32, #tpu.memory_space<any>>
    %c0_i32_75 = arith.constant 0 : i32
    %c0_i32_76 = arith.constant 0 : i32
    %130 = tpu.memref_slice %arg4[%c1_i32_71, %c0_i32_75, %c0_i32_76] : memref<2x128x128xf32, #tpu.memory_space<vmem>> -> memref<1x128x128xf32, #tpu.memory_space<vmem>>
    %131 = tpu.memref_squeeze %130 : memref<1x128x128xf32, #tpu.memory_space<vmem>> -> memref<128x128xf32, #tpu.memory_space<vmem>>
    %132 = tpu.memref_slice %arg5[%c1_i32_72] : memref<2x!tpu.dma_semaphore, #tpu.memory_space<semaphore_mem>> -> memref<1x!tpu.dma_semaphore, #tpu.memory_space<semaphore_mem>>
    %133 = tpu.memref_squeeze %132 : memref<1x!tpu.dma_semaphore, #tpu.memory_space<semaphore_mem>> -> memref<!tpu.dma_semaphore, #tpu.memory_space<semaphore_mem>>
    tpu.wait_dma2 semaphore(%133 : memref<!tpu.dma_semaphore, #tpu.memory_space<semaphore_mem>>) src(%129 : memref<128x128xf32, #tpu.memory_space<any>>) dst(%131 : memref<128x128xf32, #tpu.memory_space<vmem>>)
    %c0_i32_77 = arith.constant 0 : i32
    %c0_i32_78 = arith.constant 0 : i32
    %c424_i32 = arith.constant 424 : i32
    %c0_i32_79 = arith.constant 0 : i32
    %134 = tpu.memref_slice %arg2[%c424_i32, %c0_i32_79] : memref<648x128xf32, #tpu.memory_space<any>> -> memref<64x128xf32, #tpu.memory_space<any>>
    %c0_i32_80 = arith.constant 0 : i32
    %c0_i32_81 = arith.constant 0 : i32
    %135 = tpu.memref_slice %arg4[%c0_i32_77, %c0_i32_80, %c0_i32_81] : memref<2x128x128xf32, #tpu.memory_space<vmem>> -> memref<1x64x128xf32, #tpu.memory_space<vmem>>
    %136 = tpu.memref_squeeze %135 : memref<1x64x128xf32, #tpu.memory_space<vmem>> -> memref<64x128xf32, #tpu.memory_space<vmem>>
    %137 = tpu.memref_slice %arg5[%c0_i32_78] : memref<2x!tpu.dma_semaphore, #tpu.memory_space<semaphore_mem>> -> memref<1x!tpu.dma_semaphore, #tpu.memory_space<semaphore_mem>>
    %138 = tpu.memref_squeeze %137 : memref<1x!tpu.dma_semaphore, #tpu.memory_space<semaphore_mem>> -> memref<!tpu.dma_semaphore, #tpu.memory_space<semaphore_mem>>
    tpu.enqueue_dma source(%134 : memref<64x128xf32, #tpu.memory_space<any>>) target(%136 : memref<64x128xf32, #tpu.memory_space<vmem>>) target_semaphore(%138 : memref<!tpu.dma_semaphore, #tpu.memory_space<semaphore_mem>>)
    %c1_82 = arith.constant 1 : index
    %c0_83 = arith.constant 0 : index
    %c0_84 = arith.constant 0 : index
    %139 = vector.load %arg4[%c1_82, %c0_83, %c0_84] : memref<2x128x128xf32, #tpu.memory_space<vmem>>, vector<1x128x128xf32>
    %140 = vector.shape_cast %139 : vector<1x128x128xf32> to vector<128x128xf32>
    %cst_85 = arith.constant dense<0.000000e+00> : vector<8x128xf32>
    %141 = tpu.matmul %128, %140, %cst_85 {dimension_numbers = #tpu.dot_dimension_numbers<[1], [0], [0], [1], [0, 0, 1, 1], [], []>} : vector<8x128xf32>, vector<128x128xf32>, vector<8x128xf32> -> vector<8x128xf32>
    %142 = vector.extract_strided_slice %6 {offsets = [3, 0], sizes = [1, 128], strides = [1, 1]} : vector<16x128xf32> to vector<1x128xf32>
    %143 = vector.extract_strided_slice %6 {offsets = [10, 0], sizes = [1, 128], strides = [1, 1]} : vector<16x128xf32> to vector<1x128xf32>
    %cst_86 = arith.constant dense<0.000000e+00> : vector<128xf32>
    %144 = vector.multi_reduction <add>, %141, %cst_86 [0] : vector<8x128xf32> to vector<128xf32>
    %145 = vector.shape_cast %144 : vector<128xf32> to vector<1x128xf32>
    %cst_87 = arith.constant 1.250000e-01 : f32
    %146 = vector.broadcast %cst_87 : f32 to vector<1x128xf32>
    %147 = arith.mulf %145, %146 : vector<1x128xf32>
    %148 = arith.mulf %141, %141 : vector<8x128xf32>
    %cst_88 = arith.constant dense<0.000000e+00> : vector<128xf32>
    %149 = vector.multi_reduction <add>, %148, %cst_88 [0] : vector<8x128xf32> to vector<128xf32>
    %150 = vector.shape_cast %149 : vector<128xf32> to vector<1x128xf32>
    %cst_89 = arith.constant 1.250000e-01 : f32
    %151 = vector.broadcast %cst_89 : f32 to vector<1x128xf32>
    %152 = arith.mulf %150, %151 : vector<1x128xf32>
    %153 = arith.mulf %147, %147 : vector<1x128xf32>
    %154 = arith.subf %152, %153 : vector<1x128xf32>
    %cst_90 = arith.constant 0.000000e+00 : f32
    %155 = vector.broadcast %cst_90 : f32 to vector<1x128xf32>
    %156 = arith.maximumf %154, %155 : vector<1x128xf32>
    %cst_91 = arith.constant 9.99999974E-6 : f32
    %157 = vector.broadcast %cst_91 : f32 to vector<1x128xf32>
    %158 = arith.addf %156, %157 : vector<1x128xf32>
    %159 = math.rsqrt %158 : vector<1x128xf32>
    %160 = arith.mulf %142, %159 : vector<1x128xf32>
    %161 = arith.mulf %147, %160 : vector<1x128xf32>
    %162 = arith.subf %143, %161 : vector<1x128xf32>
    %163 = vector.broadcast %160 : vector<1x128xf32> to vector<8x128xf32>
    %164 = arith.mulf %141, %163 : vector<8x128xf32>
    %165 = vector.broadcast %162 : vector<1x128xf32> to vector<8x128xf32>
    %166 = arith.addf %164, %165 : vector<8x128xf32>
    %cst_92 = arith.constant 0.000000e+00 : f32
    %167 = vector.broadcast %cst_92 : f32 to vector<8x128xf32>
    %168 = arith.maximumf %166, %167 : vector<8x128xf32>
    %c0_i32_93 = arith.constant 0 : i32
    %c0_i32_94 = arith.constant 0 : i32
    %c424_i32_95 = arith.constant 424 : i32
    %c0_i32_96 = arith.constant 0 : i32
    %169 = tpu.memref_slice %arg2[%c424_i32_95, %c0_i32_96] : memref<648x128xf32, #tpu.memory_space<any>> -> memref<64x128xf32, #tpu.memory_space<any>>
    %c0_i32_97 = arith.constant 0 : i32
    %c0_i32_98 = arith.constant 0 : i32
    %170 = tpu.memref_slice %arg4[%c0_i32_93, %c0_i32_97, %c0_i32_98] : memref<2x128x128xf32, #tpu.memory_space<vmem>> -> memref<1x64x128xf32, #tpu.memory_space<vmem>>
    %171 = tpu.memref_squeeze %170 : memref<1x64x128xf32, #tpu.memory_space<vmem>> -> memref<64x128xf32, #tpu.memory_space<vmem>>
    %172 = tpu.memref_slice %arg5[%c0_i32_94] : memref<2x!tpu.dma_semaphore, #tpu.memory_space<semaphore_mem>> -> memref<1x!tpu.dma_semaphore, #tpu.memory_space<semaphore_mem>>
    %173 = tpu.memref_squeeze %172 : memref<1x!tpu.dma_semaphore, #tpu.memory_space<semaphore_mem>> -> memref<!tpu.dma_semaphore, #tpu.memory_space<semaphore_mem>>
    tpu.wait_dma2 semaphore(%173 : memref<!tpu.dma_semaphore, #tpu.memory_space<semaphore_mem>>) src(%169 : memref<64x128xf32, #tpu.memory_space<any>>) dst(%171 : memref<64x128xf32, #tpu.memory_space<vmem>>)
    %c1_i32_99 = arith.constant 1 : i32
    %c1_i32_100 = arith.constant 1 : i32
    %c488_i32 = arith.constant 488 : i32
    %c0_i32_101 = arith.constant 0 : i32
    %174 = tpu.memref_slice %arg2[%c488_i32, %c0_i32_101] : memref<648x128xf32, #tpu.memory_space<any>> -> memref<64x128xf32, #tpu.memory_space<any>>
    %c0_i32_102 = arith.constant 0 : i32
    %c0_i32_103 = arith.constant 0 : i32
    %175 = tpu.memref_slice %arg4[%c1_i32_99, %c0_i32_102, %c0_i32_103] : memref<2x128x128xf32, #tpu.memory_space<vmem>> -> memref<1x64x128xf32, #tpu.memory_space<vmem>>
    %176 = tpu.memref_squeeze %175 : memref<1x64x128xf32, #tpu.memory_space<vmem>> -> memref<64x128xf32, #tpu.memory_space<vmem>>
    %177 = tpu.memref_slice %arg5[%c1_i32_100] : memref<2x!tpu.dma_semaphore, #tpu.memory_space<semaphore_mem>> -> memref<1x!tpu.dma_semaphore, #tpu.memory_space<semaphore_mem>>
    %178 = tpu.memref_squeeze %177 : memref<1x!tpu.dma_semaphore, #tpu.memory_space<semaphore_mem>> -> memref<!tpu.dma_semaphore, #tpu.memory_space<semaphore_mem>>
    tpu.enqueue_dma source(%174 : memref<64x128xf32, #tpu.memory_space<any>>) target(%176 : memref<64x128xf32, #tpu.memory_space<vmem>>) target_semaphore(%178 : memref<!tpu.dma_semaphore, #tpu.memory_space<semaphore_mem>>)
    %c0_104 = arith.constant 0 : index
    %c0_105 = arith.constant 0 : index
    %c0_106 = arith.constant 0 : index
    %179 = vector.load %arg4[%c0_104, %c0_105, %c0_106] : memref<2x128x128xf32, #tpu.memory_space<vmem>>, vector<1x64x128xf32>
    %180 = vector.shape_cast %179 : vector<1x64x128xf32> to vector<64x128xf32>
    %181 = vector.extract_strided_slice %168 {offsets = [0, 0], sizes = [8, 64], strides = [1, 1]} : vector<8x128xf32> to vector<8x64xf32>
    %cst_107 = arith.constant dense<0.000000e+00> : vector<8x128xf32>
    %182 = tpu.matmul %181, %180, %cst_107 {dimension_numbers = #tpu.dot_dimension_numbers<[1], [0], [0], [1], [0, 0, 1, 1], [], []>} : vector<8x64xf32>, vector<64x128xf32>, vector<8x128xf32> -> vector<8x128xf32>
    %183 = vector.extract_strided_slice %6 {offsets = [4, 0], sizes = [1, 128], strides = [1, 1]} : vector<16x128xf32> to vector<1x128xf32>
    %184 = vector.extract_strided_slice %6 {offsets = [11, 0], sizes = [1, 128], strides = [1, 1]} : vector<16x128xf32> to vector<1x128xf32>
    %cst_108 = arith.constant dense<0.000000e+00> : vector<128xf32>
    %185 = vector.multi_reduction <add>, %182, %cst_108 [0] : vector<8x128xf32> to vector<128xf32>
    %186 = vector.shape_cast %185 : vector<128xf32> to vector<1x128xf32>
    %cst_109 = arith.constant 1.250000e-01 : f32
    %187 = vector.broadcast %cst_109 : f32 to vector<1x128xf32>
    %188 = arith.mulf %186, %187 : vector<1x128xf32>
    %189 = arith.mulf %182, %182 : vector<8x128xf32>
    %cst_110 = arith.constant dense<0.000000e+00> : vector<128xf32>
    %190 = vector.multi_reduction <add>, %189, %cst_110 [0] : vector<8x128xf32> to vector<128xf32>
    %191 = vector.shape_cast %190 : vector<128xf32> to vector<1x128xf32>
    %cst_111 = arith.constant 1.250000e-01 : f32
    %192 = vector.broadcast %cst_111 : f32 to vector<1x128xf32>
    %193 = arith.mulf %191, %192 : vector<1x128xf32>
    %194 = arith.mulf %188, %188 : vector<1x128xf32>
    %195 = arith.subf %193, %194 : vector<1x128xf32>
    %cst_112 = arith.constant 0.000000e+00 : f32
    %196 = vector.broadcast %cst_112 : f32 to vector<1x128xf32>
    %197 = arith.maximumf %195, %196 : vector<1x128xf32>
    %cst_113 = arith.constant 9.99999974E-6 : f32
    %198 = vector.broadcast %cst_113 : f32 to vector<1x128xf32>
    %199 = arith.addf %197, %198 : vector<1x128xf32>
    %200 = math.rsqrt %199 : vector<1x128xf32>
    %201 = arith.mulf %183, %200 : vector<1x128xf32>
    %202 = arith.mulf %188, %201 : vector<1x128xf32>
    %203 = arith.subf %184, %202 : vector<1x128xf32>
    %204 = vector.broadcast %201 : vector<1x128xf32> to vector<8x128xf32>
    %205 = arith.mulf %182, %204 : vector<8x128xf32>
    %206 = vector.broadcast %203 : vector<1x128xf32> to vector<8x128xf32>
    %207 = arith.addf %205, %206 : vector<8x128xf32>
    %cst_114 = arith.constant 0.000000e+00 : f32
    %208 = vector.broadcast %cst_114 : f32 to vector<8x128xf32>
    %209 = arith.maximumf %207, %208 : vector<8x128xf32>
    %c1_i32_115 = arith.constant 1 : i32
    %c1_i32_116 = arith.constant 1 : i32
    %c488_i32_117 = arith.constant 488 : i32
    %c0_i32_118 = arith.constant 0 : i32
    %210 = tpu.memref_slice %arg2[%c488_i32_117, %c0_i32_118] : memref<648x128xf32, #tpu.memory_space<any>> -> memref<64x128xf32, #tpu.memory_space<any>>
    %c0_i32_119 = arith.constant 0 : i32
    %c0_i32_120 = arith.constant 0 : i32
    %211 = tpu.memref_slice %arg4[%c1_i32_115, %c0_i32_119, %c0_i32_120] : memref<2x128x128xf32, #tpu.memory_space<vmem>> -> memref<1x64x128xf32, #tpu.memory_space<vmem>>
    %212 = tpu.memref_squeeze %211 : memref<1x64x128xf32, #tpu.memory_space<vmem>> -> memref<64x128xf32, #tpu.memory_space<vmem>>
    %213 = tpu.memref_slice %arg5[%c1_i32_116] : memref<2x!tpu.dma_semaphore, #tpu.memory_space<semaphore_mem>> -> memref<1x!tpu.dma_semaphore, #tpu.memory_space<semaphore_mem>>
    %214 = tpu.memref_squeeze %213 : memref<1x!tpu.dma_semaphore, #tpu.memory_space<semaphore_mem>> -> memref<!tpu.dma_semaphore, #tpu.memory_space<semaphore_mem>>
    tpu.wait_dma2 semaphore(%214 : memref<!tpu.dma_semaphore, #tpu.memory_space<semaphore_mem>>) src(%210 : memref<64x128xf32, #tpu.memory_space<any>>) dst(%212 : memref<64x128xf32, #tpu.memory_space<vmem>>)
    %c0_i32_121 = arith.constant 0 : i32
    %c0_i32_122 = arith.constant 0 : i32
    %c552_i32 = arith.constant 552 : i32
    %c0_i32_123 = arith.constant 0 : i32
    %215 = tpu.memref_slice %arg2[%c552_i32, %c0_i32_123] : memref<648x128xf32, #tpu.memory_space<any>> -> memref<64x128xf32, #tpu.memory_space<any>>
    %c0_i32_124 = arith.constant 0 : i32
    %c0_i32_125 = arith.constant 0 : i32
    %216 = tpu.memref_slice %arg4[%c0_i32_121, %c0_i32_124, %c0_i32_125] : memref<2x128x128xf32, #tpu.memory_space<vmem>> -> memref<1x64x128xf32, #tpu.memory_space<vmem>>
    %217 = tpu.memref_squeeze %216 : memref<1x64x128xf32, #tpu.memory_space<vmem>> -> memref<64x128xf32, #tpu.memory_space<vmem>>
    %218 = tpu.memref_slice %arg5[%c0_i32_122] : memref<2x!tpu.dma_semaphore, #tpu.memory_space<semaphore_mem>> -> memref<1x!tpu.dma_semaphore, #tpu.memory_space<semaphore_mem>>
    %219 = tpu.memref_squeeze %218 : memref<1x!tpu.dma_semaphore, #tpu.memory_space<semaphore_mem>> -> memref<!tpu.dma_semaphore, #tpu.memory_space<semaphore_mem>>
    tpu.enqueue_dma source(%215 : memref<64x128xf32, #tpu.memory_space<any>>) target(%217 : memref<64x128xf32, #tpu.memory_space<vmem>>) target_semaphore(%219 : memref<!tpu.dma_semaphore, #tpu.memory_space<semaphore_mem>>)
    %c1_126 = arith.constant 1 : index
    %c0_127 = arith.constant 0 : index
    %c0_128 = arith.constant 0 : index
    %220 = vector.load %arg4[%c1_126, %c0_127, %c0_128] : memref<2x128x128xf32, #tpu.memory_space<vmem>>, vector<1x64x128xf32>
    %221 = vector.shape_cast %220 : vector<1x64x128xf32> to vector<64x128xf32>
    %222 = vector.extract_strided_slice %209 {offsets = [0, 0], sizes = [8, 64], strides = [1, 1]} : vector<8x128xf32> to vector<8x64xf32>
    %cst_129 = arith.constant dense<0.000000e+00> : vector<8x128xf32>
    %223 = tpu.matmul %222, %221, %cst_129 {dimension_numbers = #tpu.dot_dimension_numbers<[1], [0], [0], [1], [0, 0, 1, 1], [], []>} : vector<8x64xf32>, vector<64x128xf32>, vector<8x128xf32> -> vector<8x128xf32>
    %224 = vector.extract_strided_slice %6 {offsets = [5, 0], sizes = [1, 128], strides = [1, 1]} : vector<16x128xf32> to vector<1x128xf32>
    %225 = vector.extract_strided_slice %6 {offsets = [12, 0], sizes = [1, 128], strides = [1, 1]} : vector<16x128xf32> to vector<1x128xf32>
    %cst_130 = arith.constant dense<0.000000e+00> : vector<128xf32>
    %226 = vector.multi_reduction <add>, %223, %cst_130 [0] : vector<8x128xf32> to vector<128xf32>
    %227 = vector.shape_cast %226 : vector<128xf32> to vector<1x128xf32>
    %cst_131 = arith.constant 1.250000e-01 : f32
    %228 = vector.broadcast %cst_131 : f32 to vector<1x128xf32>
    %229 = arith.mulf %227, %228 : vector<1x128xf32>
    %230 = arith.mulf %223, %223 : vector<8x128xf32>
    %cst_132 = arith.constant dense<0.000000e+00> : vector<128xf32>
    %231 = vector.multi_reduction <add>, %230, %cst_132 [0] : vector<8x128xf32> to vector<128xf32>
    %232 = vector.shape_cast %231 : vector<128xf32> to vector<1x128xf32>
    %cst_133 = arith.constant 1.250000e-01 : f32
    %233 = vector.broadcast %cst_133 : f32 to vector<1x128xf32>
    %234 = arith.mulf %232, %233 : vector<1x128xf32>
    %235 = arith.mulf %229, %229 : vector<1x128xf32>
    %236 = arith.subf %234, %235 : vector<1x128xf32>
    %cst_134 = arith.constant 0.000000e+00 : f32
    %237 = vector.broadcast %cst_134 : f32 to vector<1x128xf32>
    %238 = arith.maximumf %236, %237 : vector<1x128xf32>
    %cst_135 = arith.constant 9.99999974E-6 : f32
    %239 = vector.broadcast %cst_135 : f32 to vector<1x128xf32>
    %240 = arith.addf %238, %239 : vector<1x128xf32>
    %241 = math.rsqrt %240 : vector<1x128xf32>
    %242 = arith.mulf %224, %241 : vector<1x128xf32>
    %243 = arith.mulf %229, %242 : vector<1x128xf32>
    %244 = arith.subf %225, %243 : vector<1x128xf32>
    %245 = vector.broadcast %242 : vector<1x128xf32> to vector<8x128xf32>
    %246 = arith.mulf %223, %245 : vector<8x128xf32>
    %247 = vector.broadcast %244 : vector<1x128xf32> to vector<8x128xf32>
    %248 = arith.addf %246, %247 : vector<8x128xf32>
    %249 = arith.addf %248, %168 : vector<8x128xf32>
    %cst_136 = arith.constant 0.000000e+00 : f32
    %250 = vector.broadcast %cst_136 : f32 to vector<8x128xf32>
    %251 = arith.maximumf %249, %250 : vector<8x128xf32>
    %c0_i32_137 = arith.constant 0 : i32
    %c0_i32_138 = arith.constant 0 : i32
    %c552_i32_139 = arith.constant 552 : i32
    %c0_i32_140 = arith.constant 0 : i32
    %252 = tpu.memref_slice %arg2[%c552_i32_139, %c0_i32_140] : memref<648x128xf32, #tpu.memory_space<any>> -> memref<64x128xf32, #tpu.memory_space<any>>
    %c0_i32_141 = arith.constant 0 : i32
    %c0_i32_142 = arith.constant 0 : i32
    %253 = tpu.memref_slice %arg4[%c0_i32_137, %c0_i32_141, %c0_i32_142] : memref<2x128x128xf32, #tpu.memory_space<vmem>> -> memref<1x64x128xf32, #tpu.memory_space<vmem>>
    %254 = tpu.memref_squeeze %253 : memref<1x64x128xf32, #tpu.memory_space<vmem>> -> memref<64x128xf32, #tpu.memory_space<vmem>>
    %255 = tpu.memref_slice %arg5[%c0_i32_138] : memref<2x!tpu.dma_semaphore, #tpu.memory_space<semaphore_mem>> -> memref<1x!tpu.dma_semaphore, #tpu.memory_space<semaphore_mem>>
    %256 = tpu.memref_squeeze %255 : memref<1x!tpu.dma_semaphore, #tpu.memory_space<semaphore_mem>> -> memref<!tpu.dma_semaphore, #tpu.memory_space<semaphore_mem>>
    tpu.wait_dma2 semaphore(%256 : memref<!tpu.dma_semaphore, #tpu.memory_space<semaphore_mem>>) src(%252 : memref<64x128xf32, #tpu.memory_space<any>>) dst(%254 : memref<64x128xf32, #tpu.memory_space<vmem>>)
    %c1_i32_143 = arith.constant 1 : i32
    %c1_i32_144 = arith.constant 1 : i32
    %c616_i32 = arith.constant 616 : i32
    %c0_i32_145 = arith.constant 0 : i32
    %257 = tpu.memref_slice %arg2[%c616_i32, %c0_i32_145] : memref<648x128xf32, #tpu.memory_space<any>> -> memref<32x128xf32, #tpu.memory_space<any>>
    %c0_i32_146 = arith.constant 0 : i32
    %c0_i32_147 = arith.constant 0 : i32
    %258 = tpu.memref_slice %arg4[%c1_i32_143, %c0_i32_146, %c0_i32_147] : memref<2x128x128xf32, #tpu.memory_space<vmem>> -> memref<1x32x128xf32, #tpu.memory_space<vmem>>
    %259 = tpu.memref_squeeze %258 : memref<1x32x128xf32, #tpu.memory_space<vmem>> -> memref<32x128xf32, #tpu.memory_space<vmem>>
    %260 = tpu.memref_slice %arg5[%c1_i32_144] : memref<2x!tpu.dma_semaphore, #tpu.memory_space<semaphore_mem>> -> memref<1x!tpu.dma_semaphore, #tpu.memory_space<semaphore_mem>>
    %261 = tpu.memref_squeeze %260 : memref<1x!tpu.dma_semaphore, #tpu.memory_space<semaphore_mem>> -> memref<!tpu.dma_semaphore, #tpu.memory_space<semaphore_mem>>
    tpu.enqueue_dma source(%257 : memref<32x128xf32, #tpu.memory_space<any>>) target(%259 : memref<32x128xf32, #tpu.memory_space<vmem>>) target_semaphore(%261 : memref<!tpu.dma_semaphore, #tpu.memory_space<semaphore_mem>>)
    %c0_148 = arith.constant 0 : index
    %c0_149 = arith.constant 0 : index
    %c0_150 = arith.constant 0 : index
    %262 = vector.load %arg4[%c0_148, %c0_149, %c0_150] : memref<2x128x128xf32, #tpu.memory_space<vmem>>, vector<1x64x128xf32>
    %263 = vector.shape_cast %262 : vector<1x64x128xf32> to vector<64x128xf32>
    %264 = vector.extract_strided_slice %251 {offsets = [0, 0], sizes = [8, 64], strides = [1, 1]} : vector<8x128xf32> to vector<8x64xf32>
    %cst_151 = arith.constant dense<0.000000e+00> : vector<8x128xf32>
    %265 = tpu.matmul %264, %263, %cst_151 {dimension_numbers = #tpu.dot_dimension_numbers<[1], [0], [0], [1], [0, 0, 1, 1], [], []>} : vector<8x64xf32>, vector<64x128xf32>, vector<8x128xf32> -> vector<8x128xf32>
    %266 = vector.extract_strided_slice %6 {offsets = [6, 0], sizes = [1, 128], strides = [1, 1]} : vector<16x128xf32> to vector<1x128xf32>
    %267 = vector.extract_strided_slice %6 {offsets = [13, 0], sizes = [1, 128], strides = [1, 1]} : vector<16x128xf32> to vector<1x128xf32>
    %cst_152 = arith.constant dense<0.000000e+00> : vector<128xf32>
    %268 = vector.multi_reduction <add>, %265, %cst_152 [0] : vector<8x128xf32> to vector<128xf32>
    %269 = vector.shape_cast %268 : vector<128xf32> to vector<1x128xf32>
    %cst_153 = arith.constant 1.250000e-01 : f32
    %270 = vector.broadcast %cst_153 : f32 to vector<1x128xf32>
    %271 = arith.mulf %269, %270 : vector<1x128xf32>
    %272 = arith.mulf %265, %265 : vector<8x128xf32>
    %cst_154 = arith.constant dense<0.000000e+00> : vector<128xf32>
    %273 = vector.multi_reduction <add>, %272, %cst_154 [0] : vector<8x128xf32> to vector<128xf32>
    %274 = vector.shape_cast %273 : vector<128xf32> to vector<1x128xf32>
    %cst_155 = arith.constant 1.250000e-01 : f32
    %275 = vector.broadcast %cst_155 : f32 to vector<1x128xf32>
    %276 = arith.mulf %274, %275 : vector<1x128xf32>
    %277 = arith.mulf %271, %271 : vector<1x128xf32>
    %278 = arith.subf %276, %277 : vector<1x128xf32>
    %cst_156 = arith.constant 0.000000e+00 : f32
    %279 = vector.broadcast %cst_156 : f32 to vector<1x128xf32>
    %280 = arith.maximumf %278, %279 : vector<1x128xf32>
    %cst_157 = arith.constant 9.99999974E-6 : f32
    %281 = vector.broadcast %cst_157 : f32 to vector<1x128xf32>
    %282 = arith.addf %280, %281 : vector<1x128xf32>
    %283 = math.rsqrt %282 : vector<1x128xf32>
    %284 = arith.mulf %266, %283 : vector<1x128xf32>
    %285 = arith.mulf %271, %284 : vector<1x128xf32>
    %286 = arith.subf %267, %285 : vector<1x128xf32>
    %287 = vector.broadcast %284 : vector<1x128xf32> to vector<8x128xf32>
    %288 = arith.mulf %265, %287 : vector<8x128xf32>
    %289 = vector.broadcast %286 : vector<1x128xf32> to vector<8x128xf32>
    %290 = arith.addf %288, %289 : vector<8x128xf32>
    %cst_158 = arith.constant 0.000000e+00 : f32
    %291 = vector.broadcast %cst_158 : f32 to vector<8x128xf32>
    %292 = arith.maximumf %290, %291 : vector<8x128xf32>
    %c1_i32_159 = arith.constant 1 : i32
    %c1_i32_160 = arith.constant 1 : i32
    %c616_i32_161 = arith.constant 616 : i32
    %c0_i32_162 = arith.constant 0 : i32
    %293 = tpu.memref_slice %arg2[%c616_i32_161, %c0_i32_162] : memref<648x128xf32, #tpu.memory_space<any>> -> memref<32x128xf32, #tpu.memory_space<any>>
    %c0_i32_163 = arith.constant 0 : i32
    %c0_i32_164 = arith.constant 0 : i32
    %294 = tpu.memref_slice %arg4[%c1_i32_159, %c0_i32_163, %c0_i32_164] : memref<2x128x128xf32, #tpu.memory_space<vmem>> -> memref<1x32x128xf32, #tpu.memory_space<vmem>>
    %295 = tpu.memref_squeeze %294 : memref<1x32x128xf32, #tpu.memory_space<vmem>> -> memref<32x128xf32, #tpu.memory_space<vmem>>
    %296 = tpu.memref_slice %arg5[%c1_i32_160] : memref<2x!tpu.dma_semaphore, #tpu.memory_space<semaphore_mem>> -> memref<1x!tpu.dma_semaphore, #tpu.memory_space<semaphore_mem>>
    %297 = tpu.memref_squeeze %296 : memref<1x!tpu.dma_semaphore, #tpu.memory_space<semaphore_mem>> -> memref<!tpu.dma_semaphore, #tpu.memory_space<semaphore_mem>>
    tpu.wait_dma2 semaphore(%297 : memref<!tpu.dma_semaphore, #tpu.memory_space<semaphore_mem>>) src(%293 : memref<32x128xf32, #tpu.memory_space<any>>) dst(%295 : memref<32x128xf32, #tpu.memory_space<vmem>>)
    %c1_165 = arith.constant 1 : index
    %c0_166 = arith.constant 0 : index
    %c0_167 = arith.constant 0 : index
    %298 = vector.load %arg4[%c1_165, %c0_166, %c0_167] : memref<2x128x128xf32, #tpu.memory_space<vmem>>, vector<1x32x128xf32>
    %299 = vector.shape_cast %298 : vector<1x32x128xf32> to vector<32x128xf32>
    %300 = vector.extract_strided_slice %292 {offsets = [0, 0], sizes = [8, 32], strides = [1, 1]} : vector<8x128xf32> to vector<8x32xf32>
    %cst_168 = arith.constant dense<0.000000e+00> : vector<8x128xf32>
    %301 = tpu.matmul %300, %299, %cst_168 {dimension_numbers = #tpu.dot_dimension_numbers<[1], [0], [0], [1], [0, 0, 1, 1], [], []>} : vector<8x32xf32>, vector<32x128xf32>, vector<8x128xf32> -> vector<8x128xf32>
    %302 = vector.extract_strided_slice %6 {offsets = [14, 0], sizes = [1, 128], strides = [1, 1]} : vector<16x128xf32> to vector<1x128xf32>
    %303 = vector.broadcast %302 : vector<1x128xf32> to vector<8x128xf32>
    %304 = arith.addf %301, %303 : vector<8x128xf32>
    %c0_169 = arith.constant 0 : index
    %c0_170 = arith.constant 0 : index
    %305 = vector.load %arg3[%c0_169, %c0_170] : memref<8x128xf32, #tpu.memory_space<vmem>>, vector<8x128xf32>
    tpu.vector_store %arg3[%c0_169, %c0_170], %304 {strides = array<i32>} : memref<8x128xf32, #tpu.memory_space<vmem>>, vector<8x128xf32>,
    return
  }
}

</mosaic_0001>

<llo_original>
// kernel: pose_regressor.1
$region0: #{pose_regressor.1}
  #allocation0 [shape = 'u32[]', space=smem, size = 0x4, offset = 0x4, fixed_abs, tag = 'smem constant byte address 0x4 - core index']
  #allocation1 [shape = 'u32[144,128]{1,0:T(1,128)}', space=vmem, size = 0x12000, scoped, tag = 'internal scratch']
  #allocation2 [shape = 'f32[2,128,128]{2,1,0:T(8,128)}', space=vmem, size = 0x20000, scoped, tag = 'scratch operand']
  #allocation3 [shape = 's32[2]{0}', space=sflag, size = 0x8, scoped, tag = 'scratch operand']
  #allocation6 [shape = 's32[]', space=sflag, size = 0x4, offset = 0, fixed_abs, tag = 'sflag constant byte address 0x0 - dummy sync flag']
  #allocation7 [shape = 's32[]', space=sflag, size = 0x4, offset = 0, fixed_abs, tag = 'sflag constant byte address 0x0 - dummy sync flag']
  #allocation8 [shape = 'u32[]', space=smem, size = 0x4, offset = 0x44, fixed_abs, tag = 'smem constant byte address 0x44 - assertion arg 0']
  #allocation9 [shape = 'u32[]', space=smem, size = 0x4, offset = 0x48, fixed_abs, tag = 'smem constant byte address 0x48 - assertion arg 1']
  #allocation10 [shape = 's32[]', space=sflag, size = 0x4, offset = 0, fixed_abs, tag = 'sflag constant byte address 0x0 - dummy sync flag']
  #allocation11 [shape = 's32[]', space=sflag, size = 0x4, offset = 0, fixed_abs, tag = 'sflag constant byte address 0x0 - dummy sync flag']
  #allocation12 [shape = 's32[]', space=sflag, size = 0x4, offset = 0, fixed_abs, tag = 'sflag constant byte address 0x0 - dummy sync flag']
  #allocation13 [shape = 's32[]', space=sflag, size = 0x4, offset = 0, fixed_abs, tag = 'sflag constant byte address 0x0 - dummy sync flag']
  #allocation14 [shape = 's32[]', space=sflag, size = 0x4, offset = 0, fixed_abs, tag = 'sflag constant byte address 0x0 - dummy sync flag']
  #allocation15 [shape = 's32[]', space=sflag, size = 0x4, offset = 0, fixed_abs, tag = 'sflag constant byte address 0x0 - dummy sync flag']
  #allocation16 [shape = 's32[]', space=sflag, size = 0x4, offset = 0, fixed_abs, tag = 'sflag constant byte address 0x0 - dummy sync flag']
  #allocation17 [shape = 's32[]', space=sflag, size = 0x4, offset = 0, fixed_abs, tag = 'sflag constant byte address 0x0 - dummy sync flag']
  #allocation18 [shape = 's32[]', space=sflag, size = 0x4, offset = 0, fixed_abs, tag = 'sflag constant byte address 0x0 - dummy sync flag']
  #allocation19 [shape = 's32[]', space=sflag, size = 0x4, offset = 0, fixed_abs, tag = 'sflag constant byte address 0x0 - dummy sync flag']
  #allocation20 [shape = 's32[]', space=sflag, size = 0x4, offset = 0, fixed_abs, tag = 'sflag constant byte address 0x0 - dummy sync flag']
  #allocation21 [shape = 's32[]', space=sflag, size = 0x4, offset = 0, fixed_abs, tag = 'sflag constant byte address 0x0 - dummy sync flag']
  #allocation22 [shape = 's32[]', space=sflag, size = 0x4, offset = 0, fixed_abs, tag = 'sflag constant byte address 0x0 - dummy sync flag']
  #allocation23 [shape = 's32[]', space=sflag, size = 0x4, offset = 0, fixed_abs, tag = 'sflag constant byte address 0x0 - dummy sync flag']
  %s0 = inlined_call_operand.vmem [shape: f32[8,128], index: 0, kind: input, shape index: {}]
  %s1 = inlined_call_operand.vmem [shape: f32[16,128], index: 1, kind: input, shape index: {}]
  %s2 = inlined_call_operand.hbm [shape: f32[648,128], index: 2, kind: input, shape index: {}]
  %s3 = inlined_call_operand.hbm [shape: f32[8,128], index: 3, kind: output, shape index: {}]
  %s4 = sld [smem:[#allocation0]]
  $region50: #{pose_regressor.1} parent=0
    _
  %s6 = ssub.s32 1, %s4
  %s7 = scalar_select 0, %s6, %s4
  $region1: #{pose_regressor.1} parent=0
    #allocation4 [shape = 'u8[4096]{0}', space=vmem, size = 0x1000, scoped, tag = 'output window, operand 0, single buffered']
    #allocation5 [shape = 's32[1]{0}', space=sflag, size = 0x4, scoped, tag = 'scoped memory for pose_regressor.1']
    %8 = vsyncpa [#allocation5], 0
    // Predicated region
    $region2: #{pose_regressor.1} parent=1 // pred_check
      _
    $region3: #{pose_regressor.1} parent=1 // pred_check_branch
      %10 = sbr.rel (0) target = $region5
    $region4: #{pose_regressor.1} parent=1 // pred_region
      _
    $region5: #{pose_regressor.1} parent=1 // pred_fallthru
      _
    // Predicated region
    $region6: #{pose_regressor.1} parent=1 // pred_check
      _
    $region7: #{pose_regressor.1} parent=1 // pred_check_branch
      %12 = sbr.rel (0) target = $region9
    $region8: #{pose_regressor.1} parent=1 // pred_region
      _
    $region9: #{pose_regressor.1} parent=1 // pred_fallthru
      _
    // Predicated region
    $region10: #{pose_regressor.1} parent=1 // pred_check
      _
    $region11: #{pose_regressor.1} parent=1 // pred_check_branch
      %14 = sbr.rel target = $region13
    $region12: #{pose_regressor.1} parent=1 // pred_region
      %15 = sst [smem:[#allocation8]] [#allocation7]
      %16 = sst [smem:[#allocation9]] [#allocation6]
    $region13: #{pose_regressor.1} parent=1 // pred_fallthru
      _
    %18 = shalt.err (0)
    %s20 = sshll.u32 [#allocation2], 4
    %s21 = int_to_ptr.vmem [resolvable:$true] %s20
    %23 = dma.hbm_to_vmem [thread:$0]  %s2, 640, %s21, [#allocation3]
    %v24 = vld [vmem:[%s0] sm:$0xff]
    %v25 = vld [vmem:[%s1] sm:$0xff]
    %v26 = vld [vmem:[%s1 + $0x8] sm:$0xff]
    %s27 = smul.u32 40, 1
    %s28 = sshll.u32 %s27, 4
    %29 = dma.done [#allocation3], %s28
    %s30 = scalar_lea.hbm %s2, 640
    %s31 = scalar_lea.vmem [#allocation2], 128
    %s32 = scalar_lea.sflag [#allocation3], 1
    // Predicated region
    $region14: #{pose_regressor.1} parent=1 // pred_check
      _
    $region15: #{pose_regressor.1} parent=1 // pred_check_branch
      %34 = sbr.rel target = $region17
    $region16: #{pose_regressor.1} parent=1 // pred_region
      %35 = sst [smem:[#allocation8]] [#allocation11]
      %36 = sst [smem:[#allocation9]] [#allocation10]
    $region17: #{pose_regressor.1} parent=1 // pred_fallthru
      _
    %38 = shalt.err (0)
    %s40 = sshll.u32 %s31, 4
    %s41 = int_to_ptr.vmem [resolvable:$true] %s40
    %43 = dma.hbm_to_vmem [thread:$0]  %s30, 2048, %s41, %s32
    %v44 = vld [vmem:[#allocation2] sm:$0xff]
    %v45 = vld [vmem:[#allocation2 + $0x8] sm:$0xff]
    %v46 = vld [vmem:[#allocation2 + $0x10] sm:$0xff]
    %v47 = vld [vmem:[#allocation2 + $0x18] sm:$0xff]
    %v48 = vld [vmem:[#allocation2 + $0x20] sm:$0xff]
    %vm49 = vcmask 326656
    %v51 = vsel %vm49, %v24, 0
    %53 = vmatprep.subr.mxu0 0.0
    %54 = vmatpush1.msra.mxu0 %v44
    %55 = vmatprep.subr.mxu0 0.0
    %56 = vmatpush1.msra.mxu0 %v45
    %57 = vmatprep.subr.mxu0 0.0
    %58 = vmatpush1.msra.mxu0 %v46
    %59 = vmatprep.subr.mxu0 0.0
    %60 = vmatpush1.msra.mxu0 %v47
    %61 = vmatprep.subr.mxu0 0.0
    %62 = vmatpush1.msra.mxu0 %v48
    %63 = vmatprep.subr.mxu0 0.0
    %64 = vmatpush1.msra.mxu0 0.0
    %65 = vmatprep.subr.mxu0 0.0
    %66 = vmatpush1.msra.mxu0 0.0
    %67 = vmatprep.subr.mxu0 0.0
    %68 = vmatpush1.msra.mxu0 0.0
    %69 = vmatprep.subr.mxu0 0.0
    %70 = vmatpush1.msra.mxu0 0.0
    %71 = vmatprep.subr.mxu0 0.0
    %72 = vmatpush1.msra.mxu0 0.0
    %73 = vmatprep.subr.mxu0 0.0
    %74 = vmatpush1.msra.mxu0 0.0
    %75 = vmatprep.subr.mxu0 0.0
    %76 = vmatpush1.msra.mxu0 0.0
    %77 = vmatprep.subr.mxu0 0.0
    %78 = vmatpush1.msra.mxu0 0.0
    %79 = vmatprep.subr.mxu0 0.0
    %80 = vmatpush1.msra.mxu0 0.0
    %81 = vmatprep.subr.mxu0 0.0
    %82 = vmatpush1.msra.mxu0 0.0
    %83 = vmatprep.subr.mxu0 0.0
    %84 = vmatpush1.msra.mxu0 0.0
    %85 = vmatprep.subr.mxu0 0.0
    %86 = vmatpush1.msra.mxu0 0.0
    %87 = vmatprep.subr.mxu0 0.0
    %88 = vmatpush1.msra.mxu0 0.0
    %89 = vmatprep.subr.mxu0 0.0
    %90 = vmatpush1.msra.mxu0 0.0
    %91 = vmatprep.subr.mxu0 0.0
    %92 = vmatpush1.msra.mxu0 0.0
    %93 = vmatprep.subr.mxu0 0.0
    %94 = vmatpush1.msra.mxu0 0.0
    %95 = vmatprep.subr.mxu0 0.0
    %96 = vmatpush1.msra.mxu0 0.0
    %97 = vmatprep.subr.mxu0 0.0
    %98 = vmatpush1.msra.mxu0 0.0
    %99 = vmatprep.subr.mxu0 0.0
    %100 = vmatpush1.msra.mxu0 0.0
    %101 = vmatprep.subr.mxu0 0.0
    %102 = vmatpush1.msra.mxu0 0.0
    %103 = vmatprep.subr.mxu0 0.0
    %104 = vmatpush1.msra.mxu0 0.0
    %105 = vmatprep.subr.mxu0 0.0
    %106 = vmatpush1.msra.mxu0 0.0
    %107 = vmatprep.subr.mxu0 0.0
    %108 = vmatpush1.msra.mxu0 0.0
    %109 = vmatprep.subr.mxu0 0.0
    %110 = vmatpush1.msra.mxu0 0.0
    %111 = vmatprep.subr.mxu0 0.0
    %112 = vmatpush1.msra.mxu0 0.0
    %113 = vmatprep.subr.mxu0 0.0
    %114 = vmatpush1.msra.mxu0 0.0
    %115 = vmatprep.subr.mxu0 0.0
    %116 = vmatpush1.msra.mxu0 0.0
    %117 = vmatprep.mubr.f32.mxu0 0.0
    %118 = vmatmul.mubr.f32.gmra.mrb[0].mxu0 %v51
    %v119 = vpop.f32.mrb[0].mxu0
    %v120 = vadd.f32 0.0, %v119
    %v121 = vpop.f32.mrb[0].mxu0
    %122 = vdwg.mxu0
    %v123 = vrot.slane %v120, 4
    %v124 = vadd.f32 %v120, %v123
    %v125 = vrot.slane %v124, 2
    %v126 = vadd.f32 %v124, %v125
    %v127 = vrot.slane %v126, 1
    %v128 = vadd.f32 %v126, %v127
    %v129 = vmul.f32 %v128, 0.125
    %v130 = vmul.f32 %v120, %v120
    %v131 = vrot.slane %v130, 4
    %v132 = vadd.f32 %v130, %v131
    %v133 = vrot.slane %v132, 2
    %v134 = vadd.f32 %v132, %v133
    %v135 = vrot.slane %v134, 1
    %v136 = vadd.f32 %v134, %v135
    %v137 = vmul.f32 %v136, 0.125
    %v138 = vmul.f32 %v129, %v129
    %v139 = vsub.f32 %v137, %v138
    %v140 = vmax.f32 %v139, 0.0
    %v141 = vadd.f32 %v140, 1e-05
    %v142 = vrsqrt.pop %v141
    %v143 = vmul.f32 %v25, %v142
    %v144 = vmul.f32 %v129, %v143
    %v146 = vrot.slane %v144, 1
    %v148 = vsub.f32 %v25, %v146
    %v149 = vlaneseq
    %v150 = vshrl.u32 %v149, 7
    %v151 = vsub.s32 0, %v150
    %v152 = vrot.slane %v143, %v151
    %v153 = vmul.f32 %v120, %v152
    %v154 = vlaneseq
    %v155 = vshrl.u32 %v154, 7
    %v156 = vsub.s32 7, %v155
    %v157 = vrot.slane %v148, %v156
    %v158 = vadd.f32 %v153, %v157
    %v159 = vmax.f32 %v158, 0.0
    %s160 = smul.u32 128, 1
    %s161 = sshll.u32 %s160, 4
    %162 = dma.done %s32, %s161
    %s163 = scalar_lea.hbm %s2, 2688
    // Predicated region
    $region18: #{pose_regressor.1} parent=1 // pred_check
      _
    $region19: #{pose_regressor.1} parent=1 // pred_check_branch
      %165 = sbr.rel target = $region21
    $region20: #{pose_regressor.1} parent=1 // pred_region
      %166 = sst [smem:[#allocation8]] [#allocation13]
      %167 = sst [smem:[#allocation9]] [#allocation12]
    $region21: #{pose_regressor.1} parent=1 // pred_fallthru
      _
    %169 = shalt.err (0)
    %s171 = sshll.u32 [#allocation2], 4
    %s172 = int_to_ptr.vmem [resolvable:$true] %s171
    %174 = dma.hbm_to_vmem [thread:$0]  %s163, 2048, %s172, [#allocation3]
    %v175 = vld [vmem:[%s31] sm:$0xff]
    %v176 = vld [vmem:[%s31 + $0x8] sm:$0xff]
    %v177 = vld [vmem:[%s31 + $0x10] sm:$0xff]
    %v178 = vld [vmem:[%s31 + $0x18] sm:$0xff]
    %v179 = vld [vmem:[%s31 + $0x20] sm:$0xff]
    %v180 = vld [vmem:[%s31 + $0x28] sm:$0xff]
    %v181 = vld [vmem:[%s31 + $0x30] sm:$0xff]
    %v182 = vld [vmem:[%s31 + $0x38] sm:$0xff]
    %v183 = vld [vmem:[%s31 + $0x40] sm:$0xff]
    %v184 = vld [vmem:[%s31 + $0x48] sm:$0xff]
    %v185 = vld [vmem:[%s31 + $0x50] sm:$0xff]
    %v186 = vld [vmem:[%s31 + $0x58] sm:$0xff]
    %v187 = vld [vmem:[%s31 + $0x60] sm:$0xff]
    %v188 = vld [vmem:[%s31 + $0x68] sm:$0xff]
    %v189 = vld [vmem:[%s31 + $0x70] sm:$0xff]
    %v190 = vld [vmem:[%s31 + $0x78] sm:$0xff]
    %191 = vmatprep.subr.mxu0 0.0
    %192 = vmatpush1.msra.mxu0 %v175
    %193 = vmatprep.subr.mxu0 0.0
    %194 = vmatpush1.msra.mxu0 %v176
    %195 = vmatprep.subr.mxu0 0.0
    %196 = vmatpush1.msra.mxu0 %v177
    %197 = vmatprep.subr.mxu0 0.0
    %198 = vmatpush1.msra.mxu0 %v178
    %199 = vmatprep.subr.mxu0 0.0
    %200 = vmatpush1.msra.mxu0 %v179
    %201 = vmatprep.subr.mxu0 0.0
    %202 = vmatpush1.msra.mxu0 %v180
    %203 = vmatprep.subr.mxu0 0.0
    %204 = vmatpush1.msra.mxu0 %v181
    %205 = vmatprep.subr.mxu0 0.0
    %206 = vmatpush1.msra.mxu0 %v182
    %207 = vmatprep.subr.mxu0 0.0
    %208 = vmatpush1.msra.mxu0 %v183
    %209 = vmatprep.subr.mxu0 0.0
    %210 = vmatpush1.msra.mxu0 %v184
    %211 = vmatprep.subr.mxu0 0.0
    %212 = vmatpush1.msra.mxu0 %v185
    %213 = vmatprep.subr.mxu0 0.0
    %214 = vmatpush1.msra.mxu0 %v186
    %215 = vmatprep.subr.mxu0 0.0
    %216 = vmatpush1.msra.mxu0 %v187
    %217 = vmatprep.subr.mxu0 0.0
    %218 = vmatpush1.msra.mxu0 %v188
    %219 = vmatprep.subr.mxu0 0.0
    %220 = vmatpush1.msra.mxu0 %v189
    %221 = vmatprep.subr.mxu0 0.0
    %222 = vmatpush1.msra.mxu0 %v190
    %223 = vmatprep.subr.mxu0 0.0
    %224 = vmatpush1.msra.mxu0 0.0
    %225 = vmatprep.subr.mxu0 0.0
    %226 = vmatpush1.msra.mxu0 0.0
    %227 = vmatprep.subr.mxu0 0.0
    %228 = vmatpush1.msra.mxu0 0.0
    %229 = vmatprep.subr.mxu0 0.0
    %230 = vmatpush1.msra.mxu0 0.0
    %231 = vmatprep.subr.mxu0 0.0
    %232 = vmatpush1.msra.mxu0 0.0
    %233 = vmatprep.subr.mxu0 0.0
    %234 = vmatpush1.msra.mxu0 0.0
    %235 = vmatprep.subr.mxu0 0.0
    %236 = vmatpush1.msra.mxu0 0.0
    %237 = vmatprep.subr.mxu0 0.0
    %238 = vmatpush1.msra.mxu0 0.0
    %239 = vmatprep.subr.mxu0 0.0
    %240 = vmatpush1.msra.mxu0 0.0
    %241 = vmatprep.subr.mxu0 0.0
    %242 = vmatpush1.msra.mxu0 0.0
    %243 = vmatprep.subr.mxu0 0.0
    %244 = vmatpush1.msra.mxu0 0.0
    %245 = vmatprep.subr.mxu0 0.0
    %246 = vmatpush1.msra.mxu0 0.0
    %247 = vmatprep.subr.mxu0 0.0
    %248 = vmatpush1.msra.mxu0 0.0
    %249 = vmatprep.subr.mxu0 0.0
    %250 = vmatpush1.msra.mxu0 0.0
    %251 = vmatprep.subr.mxu0 0.0
    %252 = vmatpush1.msra.mxu0 0.0
    %253 = vmatprep.subr.mxu0 0.0
    %254 = vmatpush1.msra.mxu0 0.0
    %255 = vmatprep.mubr.f32.mxu0 0.0
    %256 = vmatmul.mubr.f32.gmra.mrb[0].mxu0 %v159
    %v257 = vpop.f32.mrb[0].mxu0
    %v258 = vadd.f32 0.0, %v257
    %v259 = vpop.f32.mrb[0].mxu0
    %260 = vdwg.mxu0
    %v261 = vrot.slane %v258, 4
    %v262 = vadd.f32 %v258, %v261
    %v263 = vrot.slane %v262, 2
    %v264 = vadd.f32 %v262, %v263
    %v265 = vrot.slane %v264, 1
    %v266 = vadd.f32 %v264, %v265
    %v267 = vmul.f32 %v266, 0.125
    %v268 = vmul.f32 %v258, %v258
    %v269 = vrot.slane %v268, 4
    %v270 = vadd.f32 %v268, %v269
    %v271 = vrot.slane %v270, 2
    %v272 = vadd.f32 %v270, %v271
    %v273 = vrot.slane %v272, 1
    %v274 = vadd.f32 %v272, %v273
    %v275 = vmul.f32 %v274, 0.125
    %v276 = vmul.f32 %v267, %v267
    %v277 = vsub.f32 %v275, %v276
    %v278 = vmax.f32 %v277, 0.0
    %v279 = vadd.f32 %v278, 1e-05
    %v280 = vrsqrt.pop %v279
    %v281 = vmul.f32 %v25, %v280
    %v282 = vmul.f32 %v267, %v281
    %v284 = vrot.slane %v282, 1
    %v286 = vsub.f32 %v26, %v284
    %v287 = vlaneseq
    %v288 = vshrl.u32 %v287, 7
    %v289 = vsub.s32 1, %v288
    %v290 = vrot.slane %v281, %v289
    %v291 = vmul.f32 %v258, %v290
    %v292 = vlaneseq
    %v293 = vshrl.u32 %v292, 7
    %v294 = vsub.s32 0, %v293
    %v295 = vrot.slane %v286, %v294
    %v296 = vadd.f32 %v291, %v295
    %v297 = vmax.f32 %v296, 0.0
    %s298 = sshll.u32 %s160, 4
    %299 = dma.done [#allocation3], %s298
    %s300 = scalar_lea.hbm %s2, 4736
    // Predicated region
    $region22: #{pose_regressor.1} parent=1 // pred_check
      _
    $region23: #{pose_regressor.1} parent=1 // pred_check_branch
      %302 = sbr.rel target = $region25
    $region24: #{pose_regressor.1} parent=1 // pred_region
      %303 = sst [smem:[#allocation8]] [#allocation15]
      %304 = sst [smem:[#allocation9]] [#allocation14]
    $region25: #{pose_regressor.1} parent=1 // pred_fallthru
      _
    %306 = shalt.err (0)
    %s308 = sshll.u32 %s31, 4
    %s309 = int_to_ptr.vmem [resolvable:$true] %s308
    %311 = dma.hbm_to_vmem [thread:$0]  %s300, 2048, %s309, %s32
    %v312 = vld [vmem:[#allocation2] sm:$0xff]
    %v313 = vld [vmem:[#allocation2 + $0x8] sm:$0xff]
    %v314 = vld [vmem:[#allocation2 + $0x10] sm:$0xff]
    %v315 = vld [vmem:[#allocation2 + $0x18] sm:$0xff]
    %v316 = vld [vmem:[#allocation2 + $0x20] sm:$0xff]
    %v317 = vld [vmem:[#allocation2 + $0x28] sm:$0xff]
    %v318 = vld [vmem:[#allocation2 + $0x30] sm:$0xff]
    %v319 = vld [vmem:[#allocation2 + $0x38] sm:$0xff]
    %v320 = vld [vmem:[#allocation2 + $0x40] sm:$0xff]
    %v321 = vld [vmem:[#allocation2 + $0x48] sm:$0xff]
    %v322 = vld [vmem:[#allocation2 + $0x50] sm:$0xff]
    %v323 = vld [vmem:[#allocation2 + $0x58] sm:$0xff]
    %v324 = vld [vmem:[#allocation2 + $0x60] sm:$0xff]
    %v325 = vld [vmem:[#allocation2 + $0x68] sm:$0xff]
    %v326 = vld [vmem:[#allocation2 + $0x70] sm:$0xff]
    %v327 = vld [vmem:[#allocation2 + $0x78] sm:$0xff]
    %328 = vmatprep.subr.mxu0 0.0
    %329 = vmatpush1.msra.mxu0 %v312
    %330 = vmatprep.subr.mxu0 0.0
    %331 = vmatpush1.msra.mxu0 %v313
    %332 = vmatprep.subr.mxu0 0.0
    %333 = vmatpush1.msra.mxu0 %v314
    %334 = vmatprep.subr.mxu0 0.0
    %335 = vmatpush1.msra.mxu0 %v315
    %336 = vmatprep.subr.mxu0 0.0
    %337 = vmatpush1.msra.mxu0 %v316
    %338 = vmatprep.subr.mxu0 0.0
    %339 = vmatpush1.msra.mxu0 %v317
    %340 = vmatprep.subr.mxu0 0.0
    %341 = vmatpush1.msra.mxu0 %v318
    %342 = vmatprep.subr.mxu0 0.0
    %343 = vmatpush1.msra.mxu0 %v319
    %344 = vmatprep.subr.mxu0 0.0
    %345 = vmatpush1.msra.mxu0 %v320
    %346 = vmatprep.subr.mxu0 0.0
    %347 = vmatpush1.msra.mxu0 %v321
    %348 = vmatprep.subr.mxu0 0.0
    %349 = vmatpush1.msra.mxu0 %v322
    %350 = vmatprep.subr.mxu0 0.0
    %351 = vmatpush1.msra.mxu0 %v323
    %352 = vmatprep.subr.mxu0 0.0
    %353 = vmatpush1.msra.mxu0 %v324
    %354 = vmatprep.subr.mxu0 0.0
    %355 = vmatpush1.msra.mxu0 %v325
    %356 = vmatprep.subr.mxu0 0.0
    %357 = vmatpush1.msra.mxu0 %v326
    %358 = vmatprep.subr.mxu0 0.0
    %359 = vmatpush1.msra.mxu0 %v327
    %360 = vmatprep.subr.mxu0 0.0
    %361 = vmatpush1.msra.mxu0 0.0
    %362 = vmatprep.subr.mxu0 0.0
    %363 = vmatpush1.msra.mxu0 0.0
    %364 = vmatprep.subr.mxu0 0.0
    %365 = vmatpush1.msra.mxu0 0.0
    %366 = vmatprep.subr.mxu0 0.0
    %367 = vmatpush1.msra.mxu0 0.0
    %368 = vmatprep.subr.mxu0 0.0
    %369 = vmatpush1.msra.mxu0 0.0
    %370 = vmatprep.subr.mxu0 0.0
    %371 = vmatpush1.msra.mxu0 0.0
    %372 = vmatprep.subr.mxu0 0.0
    %373 = vmatpush1.msra.mxu0 0.0
    %374 = vmatprep.subr.mxu0 0.0
    %375 = vmatpush1.msra.mxu0 0.0
    %376 = vmatprep.subr.mxu0 0.0
    %377 = vmatpush1.msra.mxu0 0.0
    %378 = vmatprep.subr.mxu0 0.0
    %379 = vmatpush1.msra.mxu0 0.0
    %380 = vmatprep.subr.mxu0 0.0
    %381 = vmatpush1.msra.mxu0 0.0
    %382 = vmatprep.subr.mxu0 0.0
    %383 = vmatpush1.msra.mxu0 0.0
    %384 = vmatprep.subr.mxu0 0.0
    %385 = vmatpush1.msra.mxu0 0.0
    %386 = vmatprep.subr.mxu0 0.0
    %387 = vmatpush1.msra.mxu0 0.0
    %388 = vmatprep.subr.mxu0 0.0
    %389 = vmatpush1.msra.mxu0 0.0
    %390 = vmatprep.subr.mxu0 0.0
    %391 = vmatpush1.msra.mxu0 0.0
    %392 = vmatprep.mubr.f32.mxu0 0.0
    %393 = vmatmul.mubr.f32.gmra.mrb[0].mxu0 %v297
    %v394 = vpop.f32.mrb[0].mxu0
    %v395 = vadd.f32 0.0, %v394
    %v396 = vpop.f32.mrb[0].mxu0
    %397 = vdwg.mxu0
    %v398 = vrot.slane %v395, 4
    %v399 = vadd.f32 %v395, %v398
    %v400 = vrot.slane %v399, 2
    %v401 = vadd.f32 %v399, %v400
    %v402 = vrot.slane %v401, 1
    %v403 = vadd.f32 %v401, %v402
    %v404 = vmul.f32 %v403, 0.125
    %v405 = vmul.f32 %v395, %v395
    %v406 = vrot.slane %v405, 4
    %v407 = vadd.f32 %v405, %v406
    %v408 = vrot.slane %v407, 2
    %v409 = vadd.f32 %v407, %v408
    %v410 = vrot.slane %v409, 1
    %v411 = vadd.f32 %v409, %v410
    %v412 = vmul.f32 %v411, 0.125
    %v413 = vmul.f32 %v404, %v404
    %v414 = vsub.f32 %v412, %v413
    %v415 = vmax.f32 %v414, 0.0
    %v416 = vadd.f32 %v415, 1e-05
    %v417 = vrsqrt.pop %v416
    %v418 = vmul.f32 %v25, %v417
    %v419 = vmul.f32 %v404, %v418
    %v421 = vrot.slane %v419, 1
    %v423 = vsub.f32 %v26, %v421
    %v424 = vlaneseq
    %v425 = vshrl.u32 %v424, 7
    %v426 = vsub.s32 2, %v425
    %v427 = vrot.slane %v418, %v426
    %v428 = vmul.f32 %v395, %v427
    %v429 = vlaneseq
    %v430 = vshrl.u32 %v429, 7
    %v431 = vsub.s32 1, %v430
    %v432 = vrot.slane %v423, %v431
    %v433 = vadd.f32 %v428, %v432
    %v434 = vadd.f32 %v433, %v159
    %v435 = vmax.f32 %v434, 0.0
    %s436 = sshll.u32 %s160, 4
    %437 = dma.done %s32, %s436
    %s438 = scalar_lea.hbm %s2, 6784
    // Predicated region
    $region26: #{pose_regressor.1} parent=1 // pred_check
      _
    $region27: #{pose_regressor.1} parent=1 // pred_check_branch
      %440 = sbr.rel target = $region29
    $region28: #{pose_regressor.1} parent=1 // pred_region
      %441 = sst [smem:[#allocation8]] [#allocation17]
      %442 = sst [smem:[#allocation9]] [#allocation16]
    $region29: #{pose_regressor.1} parent=1 // pred_fallthru
      _
    %444 = shalt.err (0)
    %s446 = sshll.u32 [#allocation2], 4
    %s447 = int_to_ptr.vmem [resolvable:$true] %s446
    %449 = dma.hbm_to_vmem [thread:$0]  %s438, 1024, %s447, [#allocation3]
    %v450 = vld [vmem:[%s31] sm:$0xff]
    %v451 = vld [vmem:[%s31 + $0x8] sm:$0xff]
    %v452 = vld [vmem:[%s31 + $0x10] sm:$0xff]
    %v453 = vld [vmem:[%s31 + $0x18] sm:$0xff]
    %v454 = vld [vmem:[%s31 + $0x20] sm:$0xff]
    %v455 = vld [vmem:[%s31 + $0x28] sm:$0xff]
    %v456 = vld [vmem:[%s31 + $0x30] sm:$0xff]
    %v457 = vld [vmem:[%s31 + $0x38] sm:$0xff]
    %v458 = vld [vmem:[%s31 + $0x40] sm:$0xff]
    %v459 = vld [vmem:[%s31 + $0x48] sm:$0xff]
    %v460 = vld [vmem:[%s31 + $0x50] sm:$0xff]
    %v461 = vld [vmem:[%s31 + $0x58] sm:$0xff]
    %v462 = vld [vmem:[%s31 + $0x60] sm:$0xff]
    %v463 = vld [vmem:[%s31 + $0x68] sm:$0xff]
    %v464 = vld [vmem:[%s31 + $0x70] sm:$0xff]
    %v465 = vld [vmem:[%s31 + $0x78] sm:$0xff]
    %466 = vmatprep.subr.mxu0 0.0
    %467 = vmatpush1.msra.mxu0 %v450
    %468 = vmatprep.subr.mxu0 0.0
    %469 = vmatpush1.msra.mxu0 %v451
    %470 = vmatprep.subr.mxu0 0.0
    %471 = vmatpush1.msra.mxu0 %v452
    %472 = vmatprep.subr.mxu0 0.0
    %473 = vmatpush1.msra.mxu0 %v453
    %474 = vmatprep.subr.mxu0 0.0
    %475 = vmatpush1.msra.mxu0 %v454
    %476 = vmatprep.subr.mxu0 0.0
    %477 = vmatpush1.msra.mxu0 %v455
    %478 = vmatprep.subr.mxu0 0.0
    %479 = vmatpush1.msra.mxu0 %v456
    %480 = vmatprep.subr.mxu0 0.0
    %481 = vmatpush1.msra.mxu0 %v457
    %482 = vmatprep.subr.mxu0 0.0
    %483 = vmatpush1.msra.mxu0 %v458
    %484 = vmatprep.subr.mxu0 0.0
    %485 = vmatpush1.msra.mxu0 %v459
    %486 = vmatprep.subr.mxu0 0.0
    %487 = vmatpush1.msra.mxu0 %v460
    %488 = vmatprep.subr.mxu0 0.0
    %489 = vmatpush1.msra.mxu0 %v461
    %490 = vmatprep.subr.mxu0 0.0
    %491 = vmatpush1.msra.mxu0 %v462
    %492 = vmatprep.subr.mxu0 0.0
    %493 = vmatpush1.msra.mxu0 %v463
    %494 = vmatprep.subr.mxu0 0.0
    %495 = vmatpush1.msra.mxu0 %v464
    %496 = vmatprep.subr.mxu0 0.0
    %497 = vmatpush1.msra.mxu0 %v465
    %498 = vmatprep.subr.mxu0 0.0
    %499 = vmatpush1.msra.mxu0 0.0
    %500 = vmatprep.subr.mxu0 0.0
    %501 = vmatpush1.msra.mxu0 0.0
    %502 = vmatprep.subr.mxu0 0.0
    %503 = vmatpush1.msra.mxu0 0.0
    %504 = vmatprep.subr.mxu0 0.0
    %505 = vmatpush1.msra.mxu0 0.0
    %506 = vmatprep.subr.mxu0 0.0
    %507 = vmatpush1.msra.mxu0 0.0
    %508 = vmatprep.subr.mxu0 0.0
    %509 = vmatpush1.msra.mxu0 0.0
    %510 = vmatprep.subr.mxu0 0.0
    %511 = vmatpush1.msra.mxu0 0.0
    %512 = vmatprep.subr.mxu0 0.0
    %513 = vmatpush1.msra.mxu0 0.0
    %514 = vmatprep.subr.mxu0 0.0
    %515 = vmatpush1.msra.mxu0 0.0
    %516 = vmatprep.subr.mxu0 0.0
    %517 = vmatpush1.msra.mxu0 0.0
    %518 = vmatprep.subr.mxu0 0.0
    %519 = vmatpush1.msra.mxu0 0.0
    %520 = vmatprep.subr.mxu0 0.0
    %521 = vmatpush1.msra.mxu0 0.0
    %522 = vmatprep.subr.mxu0 0.0
    %523 = vmatpush1.msra.mxu0 0.0
    %524 = vmatprep.subr.mxu0 0.0
    %525 = vmatpush1.msra.mxu0 0.0
    %526 = vmatprep.subr.mxu0 0.0
    %527 = vmatpush1.msra.mxu0 0.0
    %528 = vmatprep.subr.mxu0 0.0
    %529 = vmatpush1.msra.mxu0 0.0
    %530 = vmatprep.mubr.f32.mxu0 0.0
    %531 = vmatmul.mubr.f32.gmra.mrb[0].mxu0 %v435
    %v532 = vpop.f32.mrb[0].mxu0
    %v533 = vadd.f32 0.0, %v532
    %v534 = vpop.f32.mrb[0].mxu0
    %535 = vdwg.mxu0
    %v536 = vrot.slane %v533, 4
    %v537 = vadd.f32 %v533, %v536
    %v538 = vrot.slane %v537, 2
    %v539 = vadd.f32 %v537, %v538
    %v540 = vrot.slane %v539, 1
    %v541 = vadd.f32 %v539, %v540
    %v542 = vmul.f32 %v541, 0.125
    %v543 = vmul.f32 %v533, %v533
    %v544 = vrot.slane %v543, 4
    %v545 = vadd.f32 %v543, %v544
    %v546 = vrot.slane %v545, 2
    %v547 = vadd.f32 %v545, %v546
    %v548 = vrot.slane %v547, 1
    %v549 = vadd.f32 %v547, %v548
    %v550 = vmul.f32 %v549, 0.125
    %v551 = vmul.f32 %v542, %v542
    %v552 = vsub.f32 %v550, %v551
    %v553 = vmax.f32 %v552, 0.0
    %v554 = vadd.f32 %v553, 1e-05
    %v555 = vrsqrt.pop %v554
    %v556 = vmul.f32 %v25, %v555
    %v557 = vmul.f32 %v542, %v556
    %v559 = vrot.slane %v557, 1
    %v561 = vsub.f32 %v26, %v559
    %v562 = vlaneseq
    %v563 = vshrl.u32 %v562, 7
    %v564 = vsub.s32 3, %v563
    %v565 = vrot.slane %v556, %v564
    %v566 = vmul.f32 %v533, %v565
    %v567 = vlaneseq
    %v568 = vshrl.u32 %v567, 7
    %v569 = vsub.s32 2, %v568
    %v570 = vrot.slane %v561, %v569
    %v571 = vadd.f32 %v566, %v570
    %v572 = vmax.f32 %v571, 0.0
    %s573 = smul.u32 64, 1
    %s574 = sshll.u32 %s573, 4
    %575 = dma.done [#allocation3], %s574
    %s576 = scalar_lea.hbm %s2, 7808
    // Predicated region
    $region30: #{pose_regressor.1} parent=1 // pred_check
      _
    $region31: #{pose_regressor.1} parent=1 // pred_check_branch
      %578 = sbr.rel target = $region33
    $region32: #{pose_regressor.1} parent=1 // pred_region
      %579 = sst [smem:[#allocation8]] [#allocation19]
      %580 = sst [smem:[#allocation9]] [#allocation18]
    $region33: #{pose_regressor.1} parent=1 // pred_fallthru
      _
    %582 = shalt.err (0)
    %s584 = sshll.u32 %s31, 4
    %s585 = int_to_ptr.vmem [resolvable:$true] %s584
    %587 = dma.hbm_to_vmem [thread:$0]  %s576, 1024, %s585, %s32
    %v588 = vld [vmem:[#allocation2] sm:$0xff]
    %v589 = vld [vmem:[#allocation2 + $0x8] sm:$0xff]
    %v590 = vld [vmem:[#allocation2 + $0x10] sm:$0xff]
    %v591 = vld [vmem:[#allocation2 + $0x18] sm:$0xff]
    %v592 = vld [vmem:[#allocation2 + $0x20] sm:$0xff]
    %v593 = vld [vmem:[#allocation2 + $0x28] sm:$0xff]
    %v594 = vld [vmem:[#allocation2 + $0x30] sm:$0xff]
    %v595 = vld [vmem:[#allocation2 + $0x38] sm:$0xff]
    %vm596 = vcmask 523264
    %v598 = vsel %vm596, %v572, 0
    %600 = vmatprep.subr.mxu0 0.0
    %601 = vmatpush1.msra.mxu0 %v588
    %602 = vmatprep.subr.mxu0 0.0
    %603 = vmatpush1.msra.mxu0 %v589
    %604 = vmatprep.subr.mxu0 0.0
    %605 = vmatpush1.msra.mxu0 %v590
    %606 = vmatprep.subr.mxu0 0.0
    %607 = vmatpush1.msra.mxu0 %v591
    %608 = vmatprep.subr.mxu0 0.0
    %609 = vmatpush1.msra.mxu0 %v592
    %610 = vmatprep.subr.mxu0 0.0
    %611 = vmatpush1.msra.mxu0 %v593
    %612 = vmatprep.subr.mxu0 0.0
    %613 = vmatpush1.msra.mxu0 %v594
    %614 = vmatprep.subr.mxu0 0.0
    %615 = vmatpush1.msra.mxu0 %v595
    %616 = vmatprep.subr.mxu0 0.0
    %617 = vmatpush1.msra.mxu0 0.0
    %618 = vmatprep.subr.mxu0 0.0
    %619 = vmatpush1.msra.mxu0 0.0
    %620 = vmatprep.subr.mxu0 0.0
    %621 = vmatpush1.msra.mxu0 0.0
    %622 = vmatprep.subr.mxu0 0.0
    %623 = vmatpush1.msra.mxu0 0.0
    %624 = vmatprep.subr.mxu0 0.0
    %625 = vmatpush1.msra.mxu0 0.0
    %626 = vmatprep.subr.mxu0 0.0
    %627 = vmatpush1.msra.mxu0 0.0
    %628 = vmatprep.subr.mxu0 0.0
    %629 = vmatpush1.msra.mxu0 0.0
    %630 = vmatprep.subr.mxu0 0.0
    %631 = vmatpush1.msra.mxu0 0.0
    %632 = vmatprep.subr.mxu0 0.0
    %633 = vmatpush1.msra.mxu0 0.0
    %634 = vmatprep.subr.mxu0 0.0
    %635 = vmatpush1.msra.mxu0 0.0
    %636 = vmatprep.subr.mxu0 0.0
    %637 = vmatpush1.msra.mxu0 0.0
    %638 = vmatprep.subr.mxu0 0.0
    %639 = vmatpush1.msra.mxu0 0.0
    %640 = vmatprep.subr.mxu0 0.0
    %641 = vmatpush1.msra.mxu0 0.0
    %642 = vmatprep.subr.mxu0 0.0
    %643 = vmatpush1.msra.mxu0 0.0
    %644 = vmatprep.subr.mxu0 0.0
    %645 = vmatpush1.msra.mxu0 0.0
    %646 = vmatprep.subr.mxu0 0.0
    %647 = vmatpush1.msra.mxu0 0.0
    %648 = vmatprep.subr.mxu0 0.0
    %649 = vmatpush1.msra.mxu0 0.0
    %650 = vmatprep.subr.mxu0 0.0
    %651 = vmatpush1.msra.mxu0 0.0
    %652 = vmatprep.subr.mxu0 0.0
    %653 = vmatpush1.msra.mxu0 0.0
    %654 = vmatprep.subr.mxu0 0.0
    %655 = vmatpush1.msra.mxu0 0.0
    %656 = vmatprep.subr.mxu0 0.0
    %657 = vmatpush1.msra.mxu0 0.0
    %658 = vmatprep.subr.mxu0 0.0
    %659 = vmatpush1.msra.mxu0 0.0
    %660 = vmatprep.subr.mxu0 0.0
    %661 = vmatpush1.msra.mxu0 0.0
    %662 = vmatprep.subr.mxu0 0.0
    %663 = vmatpush1.msra.mxu0 0.0
    %664 = vmatprep.mubr.f32.mxu0 0.0
    %665 = vmatmul.mubr.f32.gmra.mrb[0].mxu0 %v598
    %v666 = vpop.f32.mrb[0].mxu0
    %v667 = vadd.f32 0.0, %v666
    %v668 = vpop.f32.mrb[0].mxu0
    %669 = vdwg.mxu0
    %v670 = vrot.slane %v667, 4
    %v671 = vadd.f32 %v667, %v670
    %v672 = vrot.slane %v671, 2
    %v673 = vadd.f32 %v671, %v672
    %v674 = vrot.slane %v673, 1
    %v675 = vadd.f32 %v673, %v674
    %v676 = vmul.f32 %v675, 0.125
    %v677 = vmul.f32 %v667, %v667
    %v678 = vrot.slane %v677, 4
    %v679 = vadd.f32 %v677, %v678
    %v680 = vrot.slane %v679, 2
    %v681 = vadd.f32 %v679, %v680
    %v682 = vrot.slane %v681, 1
    %v683 = vadd.f32 %v681, %v682
    %v684 = vmul.f32 %v683, 0.125
    %v685 = vmul.f32 %v676, %v676
    %v686 = vsub.f32 %v684, %v685
    %v687 = vmax.f32 %v686, 0.0
    %v688 = vadd.f32 %v687, 1e-05
    %v689 = vrsqrt.pop %v688
    %v690 = vmul.f32 %v25, %v689
    %v691 = vmul.f32 %v676, %v690
    %v693 = vrot.slane %v691, 1
    %v695 = vsub.f32 %v26, %v693
    %v696 = vlaneseq
    %v697 = vshrl.u32 %v696, 7
    %v698 = vsub.s32 4, %v697
    %v699 = vrot.slane %v690, %v698
    %v700 = vmul.f32 %v667, %v699
    %v701 = vlaneseq
    %v702 = vshrl.u32 %v701, 7
    %v703 = vsub.s32 3, %v702
    %v704 = vrot.slane %v695, %v703
    %v705 = vadd.f32 %v700, %v704
    %v706 = vmax.f32 %v705, 0.0
    %s707 = sshll.u32 %s573, 4
    %708 = dma.done %s32, %s707
    %s709 = scalar_lea.hbm %s2, 8832
    // Predicated region
    $region34: #{pose_regressor.1} parent=1 // pred_check
      _
    $region35: #{pose_regressor.1} parent=1 // pred_check_branch
      %711 = sbr.rel target = $region37
    $region36: #{pose_regressor.1} parent=1 // pred_region
      %712 = sst [smem:[#allocation8]] [#allocation21]
      %713 = sst [smem:[#allocation9]] [#allocation20]
    $region37: #{pose_regressor.1} parent=1 // pred_fallthru
      _
    %715 = shalt.err (0)
    %s717 = sshll.u32 [#allocation2], 4
    %s718 = int_to_ptr.vmem [resolvable:$true] %s717
    %720 = dma.hbm_to_vmem [thread:$0]  %s709, 1024, %s718, [#allocation3]
    %v721 = vld [vmem:[%s31] sm:$0xff]
    %v722 = vld [vmem:[%s31 + $0x8] sm:$0xff]
    %v723 = vld [vmem:[%s31 + $0x10] sm:$0xff]
    %v724 = vld [vmem:[%s31 + $0x18] sm:$0xff]
    %v725 = vld [vmem:[%s31 + $0x20] sm:$0xff]
    %v726 = vld [vmem:[%s31 + $0x28] sm:$0xff]
    %v727 = vld [vmem:[%s31 + $0x30] sm:$0xff]
    %v728 = vld [vmem:[%s31 + $0x38] sm:$0xff]
    %v730 = vsel %vm596, %v706, 0
    %732 = vmatprep.subr.mxu0 0.0
    %733 = vmatpush1.msra.mxu0 %v721
    %734 = vmatprep.subr.mxu0 0.0
    %735 = vmatpush1.msra.mxu0 %v722
    %736 = vmatprep.subr.mxu0 0.0
    %737 = vmatpush1.msra.mxu0 %v723
    %738 = vmatprep.subr.mxu0 0.0
    %739 = vmatpush1.msra.mxu0 %v724
    %740 = vmatprep.subr.mxu0 0.0
    %741 = vmatpush1.msra.mxu0 %v725
    %742 = vmatprep.subr.mxu0 0.0
    %743 = vmatpush1.msra.mxu0 %v726
    %744 = vmatprep.subr.mxu0 0.0
    %745 = vmatpush1.msra.mxu0 %v727
    %746 = vmatprep.subr.mxu0 0.0
    %747 = vmatpush1.msra.mxu0 %v728
    %748 = vmatprep.subr.mxu0 0.0
    %749 = vmatpush1.msra.mxu0 0.0
    %750 = vmatprep.subr.mxu0 0.0
    %751 = vmatpush1.msra.mxu0 0.0
    %752 = vmatprep.subr.mxu0 0.0
    %753 = vmatpush1.msra.mxu0 0.0
    %754 = vmatprep.subr.mxu0 0.0
    %755 = vmatpush1.msra.mxu0 0.0
    %756 = vmatprep.subr.mxu0 0.0
    %757 = vmatpush1.msra.mxu0 0.0
    %758 = vmatprep.subr.mxu0 0.0
    %759 = vmatpush1.msra.mxu0 0.0
    %760 = vmatprep.subr.mxu0 0.0
    %761 = vmatpush1.msra.mxu0 0.0
    %762 = vmatprep.subr.mxu0 0.0
    %763 = vmatpush1.msra.mxu0 0.0
    %764 = vmatprep.subr.mxu0 0.0
    %765 = vmatpush1.msra.mxu0 0.0
    %766 = vmatprep.subr.mxu0 0.0
    %767 = vmatpush1.msra.mxu0 0.0
    %768 = vmatprep.subr.mxu0 0.0
    %769 = vmatpush1.msra.mxu0 0.0
    %770 = vmatprep.subr.mxu0 0.0
    %771 = vmatpush1.msra.mxu0 0.0
    %772 = vmatprep.subr.mxu0 0.0
    %773 = vmatpush1.msra.mxu0 0.0
    %774 = vmatprep.subr.mxu0 0.0
    %775 = vmatpush1.msra.mxu0 0.0
    %776 = vmatprep.subr.mxu0 0.0
    %777 = vmatpush1.msra.mxu0 0.0
    %778 = vmatprep.subr.mxu0 0.0
    %779 = vmatpush1.msra.mxu0 0.0
    %780 = vmatprep.subr.mxu0 0.0
    %781 = vmatpush1.msra.mxu0 0.0
    %782 = vmatprep.subr.mxu0 0.0
    %783 = vmatpush1.msra.mxu0 0.0
    %784 = vmatprep.subr.mxu0 0.0
    %785 = vmatpush1.msra.mxu0 0.0
    %786 = vmatprep.subr.mxu0 0.0
    %787 = vmatpush1.msra.mxu0 0.0
    %788 = vmatprep.subr.mxu0 0.0
    %789 = vmatpush1.msra.mxu0 0.0
    %790 = vmatprep.subr.mxu0 0.0
    %791 = vmatpush1.msra.mxu0 0.0
    %792 = vmatprep.subr.mxu0 0.0
    %793 = vmatpush1.msra.mxu0 0.0
    %794 = vmatprep.subr.mxu0 0.0
    %795 = vmatpush1.msra.mxu0 0.0
    %796 = vmatprep.mubr.f32.mxu0 0.0
    %797 = vmatmul.mubr.f32.gmra.mrb[0].mxu0 %v730
    %v798 = vpop.f32.mrb[0].mxu0
    %v799 = vadd.f32 0.0, %v798
    %v800 = vpop.f32.mrb[0].mxu0
    %801 = vdwg.mxu0
    %v802 = vrot.slane %v799, 4
    %v803 = vadd.f32 %v799, %v802
    %v804 = vrot.slane %v803, 2
    %v805 = vadd.f32 %v803, %v804
    %v806 = vrot.slane %v805, 1
    %v807 = vadd.f32 %v805, %v806
    %v808 = vmul.f32 %v807, 0.125
    %v809 = vmul.f32 %v799, %v799
    %v810 = vrot.slane %v809, 4
    %v811 = vadd.f32 %v809, %v810
    %v812 = vrot.slane %v811, 2
    %v813 = vadd.f32 %v811, %v812
    %v814 = vrot.slane %v813, 1
    %v815 = vadd.f32 %v813, %v814
    %v816 = vmul.f32 %v815, 0.125
    %v817 = vmul.f32 %v808, %v808
    %v818 = vsub.f32 %v816, %v817
    %v819 = vmax.f32 %v818, 0.0
    %v820 = vadd.f32 %v819, 1e-05
    %v821 = vrsqrt.pop %v820
    %v822 = vmul.f32 %v25, %v821
    %v823 = vmul.f32 %v808, %v822
    %v825 = vrot.slane %v823, 1
    %v827 = vsub.f32 %v26, %v825
    %v828 = vlaneseq
    %v829 = vshrl.u32 %v828, 7
    %v830 = vsub.s32 5, %v829
    %v831 = vrot.slane %v822, %v830
    %v832 = vmul.f32 %v799, %v831
    %v833 = vlaneseq
    %v834 = vshrl.u32 %v833, 7
    %v835 = vsub.s32 4, %v834
    %v836 = vrot.slane %v827, %v835
    %v837 = vadd.f32 %v832, %v836
    %v838 = vadd.f32 %v837, %v572
    %v839 = vmax.f32 %v838, 0.0
    %s840 = sshll.u32 %s573, 4
    %841 = dma.done [#allocation3], %s840
    %s842 = scalar_lea.hbm %s2, 9856
    // Predicated region
    $region38: #{pose_regressor.1} parent=1 // pred_check
      _
    $region39: #{pose_regressor.1} parent=1 // pred_check_branch
      %844 = sbr.rel target = $region41
    $region40: #{pose_regressor.1} parent=1 // pred_region
      %845 = sst [smem:[#allocation8]] [#allocation23]
      %846 = sst [smem:[#allocation9]] [#allocation22]
    $region41: #{pose_regressor.1} parent=1 // pred_fallthru
      _
    %848 = shalt.err (0)
    %s850 = sshll.u32 %s31, 4
    %s851 = int_to_ptr.vmem [resolvable:$true] %s850
    %853 = dma.hbm_to_vmem [thread:$0]  %s842, 512, %s851, %s32
    %v854 = vld [vmem:[#allocation2] sm:$0xff]
    %v855 = vld [vmem:[#allocation2 + $0x8] sm:$0xff]
    %v856 = vld [vmem:[#allocation2 + $0x10] sm:$0xff]
    %v857 = vld [vmem:[#allocation2 + $0x18] sm:$0xff]
    %v858 = vld [vmem:[#allocation2 + $0x20] sm:$0xff]
    %v859 = vld [vmem:[#allocation2 + $0x28] sm:$0xff]
    %v860 = vld [vmem:[#allocation2 + $0x30] sm:$0xff]
    %v861 = vld [vmem:[#allocation2 + $0x38] sm:$0xff]
    %v863 = vsel %vm596, %v839, 0
    %865 = vmatprep.subr.mxu0 0.0
    %866 = vmatpush1.msra.mxu0 %v854
    %867 = vmatprep.subr.mxu0 0.0
    %868 = vmatpush1.msra.mxu0 %v855
    %869 = vmatprep.subr.mxu0 0.0
    %870 = vmatpush1.msra.mxu0 %v856
    %871 = vmatprep.subr.mxu0 0.0
    %872 = vmatpush1.msra.mxu0 %v857
    %873 = vmatprep.subr.mxu0 0.0
    %874 = vmatpush1.msra.mxu0 %v858
    %875 = vmatprep.subr.mxu0 0.0
    %876 = vmatpush1.msra.mxu0 %v859
    %877 = vmatprep.subr.mxu0 0.0
    %878 = vmatpush1.msra.mxu0 %v860
    %879 = vmatprep.subr.mxu0 0.0
    %880 = vmatpush1.msra.mxu0 %v861
    %881 = vmatprep.subr.mxu0 0.0
    %882 = vmatpush1.msra.mxu0 0.0
    %883 = vmatprep.subr.mxu0 0.0
    %884 = vmatpush1.msra.mxu0 0.0
    %885 = vmatprep.subr.mxu0 0.0
    %886 = vmatpush1.msra.mxu0 0.0
    %887 = vmatprep.subr.mxu0 0.0
    %888 = vmatpush1.msra.mxu0 0.0
    %889 = vmatprep.subr.mxu0 0.0
    %890 = vmatpush1.msra.mxu0 0.0
    %891 = vmatprep.subr.mxu0 0.0
    %892 = vmatpush1.msra.mxu0 0.0
    %893 = vmatprep.subr.mxu0 0.0
    %894 = vmatpush1.msra.mxu0 0.0
    %895 = vmatprep.subr.mxu0 0.0
    %896 = vmatpush1.msra.mxu0 0.0
    %897 = vmatprep.subr.mxu0 0.0
    %898 = vmatpush1.msra.mxu0 0.0
    %899 = vmatprep.subr.mxu0 0.0
    %900 = vmatpush1.msra.mxu0 0.0
    %901 = vmatprep.subr.mxu0 0.0
    %902 = vmatpush1.msra.mxu0 0.0
    %903 = vmatprep.subr.mxu0 0.0
    %904 = vmatpush1.msra.mxu0 0.0
    %905 = vmatprep.subr.mxu0 0.0
    %906 = vmatpush1.msra.mxu0 0.0
    %907 = vmatprep.subr.mxu0 0.0
    %908 = vmatpush1.msra.mxu0 0.0
    %909 = vmatprep.subr.mxu0 0.0
    %910 = vmatpush1.msra.mxu0 0.0
    %911 = vmatprep.subr.mxu0 0.0
    %912 = vmatpush1.msra.mxu0 0.0
    %913 = vmatprep.subr.mxu0 0.0
    %914 = vmatpush1.msra.mxu0 0.0
    %915 = vmatprep.subr.mxu0 0.0
    %916 = vmatpush1.msra.mxu0 0.0
    %917 = vmatprep.subr.mxu0 0.0
    %918 = vmatpush1.msra.mxu0 0.0
    %919 = vmatprep.subr.mxu0 0.0
    %920 = vmatpush1.msra.mxu0 0.0
    %921 = vmatprep.subr.mxu0 0.0
    %922 = vmatpush1.msra.mxu0 0.0
    %923 = vmatprep.subr.mxu0 0.0
    %924 = vmatpush1.msra.mxu0 0.0
    %925 = vmatprep.subr.mxu0 0.0
    %926 = vmatpush1.msra.mxu0 0.0
    %927 = vmatprep.subr.mxu0 0.0
    %928 = vmatpush1.msra.mxu0 0.0
    %929 = vmatprep.mubr.f32.mxu0 0.0
    %930 = vmatmul.mubr.f32.gmra.mrb[0].mxu0 %v863
    %v931 = vpop.f32.mrb[0].mxu0
    %v932 = vadd.f32 0.0, %v931
    %v933 = vpop.f32.mrb[0].mxu0
    %934 = vdwg.mxu0
    %v935 = vrot.slane %v932, 4
    %v936 = vadd.f32 %v932, %v935
    %v937 = vrot.slane %v936, 2
    %v938 = vadd.f32 %v936, %v937
    %v939 = vrot.slane %v938, 1
    %v940 = vadd.f32 %v938, %v939
    %v941 = vmul.f32 %v940, 0.125
    %v942 = vmul.f32 %v932, %v932
    %v943 = vrot.slane %v942, 4
    %v944 = vadd.f32 %v942, %v943
    %v945 = vrot.slane %v944, 2
    %v946 = vadd.f32 %v944, %v945
    %v947 = vrot.slane %v946, 1
    %v948 = vadd.f32 %v946, %v947
    %v949 = vmul.f32 %v948, 0.125
    %v950 = vmul.f32 %v941, %v941
    %v951 = vsub.f32 %v949, %v950
    %v952 = vmax.f32 %v951, 0.0
    %v953 = vadd.f32 %v952, 1e-05
    %v954 = vrsqrt.pop %v953
    %v955 = vmul.f32 %v25, %v954
    %v956 = vmul.f32 %v941, %v955
    %v958 = vrot.slane %v956, 1
    %v960 = vsub.f32 %v26, %v958
    %v961 = vlaneseq
    %v962 = vshrl.u32 %v961, 7
    %v963 = vsub.s32 6, %v962
    %v964 = vrot.slane %v955, %v963
    %v965 = vmul.f32 %v932, %v964
    %v966 = vlaneseq
    %v967 = vshrl.u32 %v966, 7
    %v968 = vsub.s32 5, %v967
    %v969 = vrot.slane %v960, %v968
    %v970 = vadd.f32 %v965, %v969
    %v971 = vmax.f32 %v970, 0.0
    %s972 = smul.u32 32, 1
    %s973 = sshll.u32 %s972, 4
    %974 = dma.done %s32, %s973
    %v975 = vld [vmem:[%s31] sm:$0xff]
    %v976 = vld [vmem:[%s31 + $0x8] sm:$0xff]
    %v977 = vld [vmem:[%s31 + $0x10] sm:$0xff]
    %v978 = vld [vmem:[%s31 + $0x18] sm:$0xff]
    %v979 = vlaneseq
    %v980 = vshrl.u32 %v979, 7
    %v981 = vsub.s32 6, %v980
    %v982 = vrot.slane %v26, %v981
    %vm983 = vcmask 261120
    %v985 = vsel %vm983, %v971, 0
    %987 = vmatprep.subr.mxu0 0.0
    %988 = vmatpush1.msra.mxu0 %v975
    %989 = vmatprep.subr.mxu0 0.0
    %990 = vmatpush1.msra.mxu0 %v976
    %991 = vmatprep.subr.mxu0 0.0
    %992 = vmatpush1.msra.mxu0 %v977
    %993 = vmatprep.subr.mxu0 0.0
    %994 = vmatpush1.msra.mxu0 %v978
    %995 = vmatprep.subr.mxu0 0.0
    %996 = vmatpush1.msra.mxu0 0.0
    %997 = vmatprep.subr.mxu0 0.0
    %998 = vmatpush1.msra.mxu0 0.0
    %999 = vmatprep.subr.mxu0 0.0
    %1000 = vmatpush1.msra.mxu0 0.0
    %1001 = vmatprep.subr.mxu0 0.0
    %1002 = vmatpush1.msra.mxu0 0.0
    %1003 = vmatprep.subr.mxu0 0.0
    %1004 = vmatpush1.msra.mxu0 0.0
    %1005 = vmatprep.subr.mxu0 0.0
    %1006 = vmatpush1.msra.mxu0 0.0
    %1007 = vmatprep.subr.mxu0 0.0
    %1008 = vmatpush1.msra.mxu0 0.0
    %1009 = vmatprep.subr.mxu0 0.0
    %1010 = vmatpush1.msra.mxu0 0.0
    %1011 = vmatprep.subr.mxu0 0.0
    %1012 = vmatpush1.msra.mxu0 0.0
    %1013 = vmatprep.subr.mxu0 0.0
    %1014 = vmatpush1.msra.mxu0 0.0
    %1015 = vmatprep.subr.mxu0 0.0
    %1016 = vmatpush1.msra.mxu0 0.0
    %1017 = vmatprep.subr.mxu0 0.0
    %1018 = vmatpush1.msra.mxu0 0.0
    %1019 = vmatprep.subr.mxu0 0.0
    %1020 = vmatpush1.msra.mxu0 0.0
    %1021 = vmatprep.subr.mxu0 0.0
    %1022 = vmatpush1.msra.mxu0 0.0
    %1023 = vmatprep.subr.mxu0 0.0
    %1024 = vmatpush1.msra.mxu0 0.0
    %1025 = vmatprep.subr.mxu0 0.0
    %1026 = vmatpush1.msra.mxu0 0.0
    %1027 = vmatprep.subr.mxu0 0.0
    %1028 = vmatpush1.msra.mxu0 0.0
    %1029 = vmatprep.subr.mxu0 0.0
    %1030 = vmatpush1.msra.mxu0 0.0
    %1031 = vmatprep.subr.mxu0 0.0
    %1032 = vmatpush1.msra.mxu0 0.0
    %1033 = vmatprep.subr.mxu0 0.0
    %1034 = vmatpush1.msra.mxu0 0.0
    %1035 = vmatprep.subr.mxu0 0.0
    %1036 = vmatpush1.msra.mxu0 0.0
    %1037 = vmatprep.subr.mxu0 0.0
    %1038 = vmatpush1.msra.mxu0 0.0
    %1039 = vmatprep.subr.mxu0 0.0
    %1040 = vmatpush1.msra.mxu0 0.0
    %1041 = vmatprep.subr.mxu0 0.0
    %1042 = vmatpush1.msra.mxu0 0.0
    %1043 = vmatprep.subr.mxu0 0.0
    %1044 = vmatpush1.msra.mxu0 0.0
    %1045 = vmatprep.subr.mxu0 0.0
    %1046 = vmatpush1.msra.mxu0 0.0
    %1047 = vmatprep.subr.mxu0 0.0
    %1048 = vmatpush1.msra.mxu0 0.0
    %1049 = vmatprep.subr.mxu0 0.0
    %1050 = vmatpush1.msra.mxu0 0.0
    %1051 = vmatprep.mubr.f32.mxu0 0.0
    %1052 = vmatmul.mubr.f32.gmra.mrb[0].mxu0 %v985
    %v1053 = vpop.f32.mrb[0].mxu0
    %v1054 = vadd.f32 %v982, %v1053
    %v1055 = vpop.f32.mrb[0].mxu0
    %1056 = vdwg.mxu0
    %1057 = vst [vmem:[#allocation4] sm:$0xff] %v1054
    // Predicated region
    $region42: #{pose_regressor.1} parent=1 // pred_check
      _
    $region43: #{pose_regressor.1} parent=1 // pred_check_branch
      %1059 = sbr.rel (0) target = $region45
    $region44: #{pose_regressor.1} parent=1 // pred_region
      %s1061 = ssub.s32 128, 128
      %1062 = vsyncadd [#allocation5], %s1061
      %s1064 = sshll.u32 [#allocation4], 4
      %s1065 = int_to_ptr.vmem [resolvable:$true] %s1064
      %1067 = dma.vmem_to_hbm [thread:$0]  %s1065, 128, %s3, [#allocation5]
    $region45: #{pose_regressor.1} parent=1 // pred_fallthru
      _
    // Predicated region
    $region46: #{pose_regressor.1} parent=1 // pred_check
      _
    $region47: #{pose_regressor.1} parent=1 // pred_check_branch
      %1069 = sbr.rel (0) target = $region49
    $region48: #{pose_regressor.1} parent=1 // pred_region
      %1070 = dma.done [#allocation5], 128
    $region49: #{pose_regressor.1} parent=1 // pred_fallthru
      _
    %1071 = vsyncpa [#allocation5], 1
  %1072 = vsyncmov [#allocation3]
  %s1073 = vpop.sfrf %1072
  %p1074 = scmp.eq.s32.totalorder %s1073, 0
  %p1075 = pneg %p1074
  %1077 = shalt.err (%p1075)
  %s1078 = scalar_lea.sflag [#allocation3], 1
  %1079 = vsyncmov %s1078
  %s1080 = vpop.sfrf %1079
  %p1081 = scmp.eq.s32.totalorder %s1080, 0
  %p1082 = pneg %p1081
  %1084 = shalt.err (%p1082)

</llo_original>
